<compile_context>
chip_gen: v5e
topology: v5e:2x2
jax: 0.10.0
libtpu: 0.0.40
codegen_flags: <defaults>
</compile_context>

<pallas_src>
import jax
import jax.numpy as jnp
from jax.experimental import pallas as pl
from jax.experimental.pallas import tpu as pltpu


# ----------------------------------------------------------------------------
# Pallas kernels
# ----------------------------------------------------------------------------
def _conv_gemm_relu_pool_kernel(p00_ref, p01_ref, p10_ref, p11_ref,
                                w_ref, b_ref, o_ref):
    """o = relu(max_g(W @ patches_g) + b).

    W:(OCp,K)  patches_g:(K,Mt)  b:(OCp,1)  o:(OCp,Mt).
    The max over the four pool-quadrant GEMMs *is* the 2x2 stride-2 max pool.
    """
    w = w_ref[...]
    s = jnp.dot(w, p00_ref[...], preferred_element_type=jnp.float32)
    s = jnp.maximum(s, jnp.dot(w, p01_ref[...], preferred_element_type=jnp.float32))
    s = jnp.maximum(s, jnp.dot(w, p10_ref[...], preferred_element_type=jnp.float32))
    s = jnp.maximum(s, jnp.dot(w, p11_ref[...], preferred_element_type=jnp.float32))
    o_ref[...] = jnp.maximum(s + b_ref[...], 0.0)


def conv_gemm_relu_pool(patches, w_mat, b_col, *, tile_m=512):
    """patches: 4 arrays (K, M); w_mat: (OCp, K); b_col: (OCp, 1) -> (OCp, M).

    OCp (sublanes) is pre-padded to a multiple of 8 at init; M (lanes) is the
    pooled spatial*batch extent.  For large M the lane axis is tiled (tile_m is
    a multiple of 128) and marked "parallel" so v7x's two TensorCores split it.
    """
    K, M = patches[0].shape
    OCp = w_mat.shape[0]
    if M <= tile_m:
        bm, grid = M, (1,)                       # full-extent block (legal even if ragged)
    else:
        bm, grid = tile_m, (pl.cdiv(M, tile_m),)

    p_spec = pl.BlockSpec((K, bm), lambda i: (0, i))
    w_spec = pl.BlockSpec((OCp, K), lambda i: (0, 0))
    b_spec = pl.BlockSpec((OCp, 1), lambda i: (0, 0))
    o_spec = pl.BlockSpec((OCp, bm), lambda i: (0, i))

    return pl.pallas_call(
        _conv_gemm_relu_pool_kernel,
        out_shape=jax.ShapeDtypeStruct((OCp, M), jnp.float32),
        grid=grid,
        in_specs=[p_spec, p_spec, p_spec, p_spec, w_spec, b_spec],
        out_specs=o_spec,
        compiler_params=pltpu.CompilerParams(
            dimension_semantics=("parallel",)),
    )(*patches, w_mat, b_col)


def _fc_head_kernel(x_ref, w1_ref, b1_ref, w2_ref, b2_ref, w3_ref, b3_ref,
                    o_ref):
    """Fused fc1 -> relu -> fc2 -> relu -> fc3; all weights resident in VMEM."""
    h = jnp.dot(x_ref[...], w1_ref[...], preferred_element_type=jnp.float32)
    h = jnp.maximum(h + b1_ref[...], 0.0)
    h = jnp.dot(h, w2_ref[...], preferred_element_type=jnp.float32)
    h = jnp.maximum(h + b2_ref[...], 0.0)
    o_ref[...] = (jnp.dot(h, w3_ref[...], preferred_element_type=jnp.float32)
                  + b3_ref[...])


def fc_head(x, w1t, b1r, w2t, b2r, w3t, b3r):
    """x:(B,400) -> logits (B,10); single kernel launch for the whole FC head."""
    B = x.shape[0]
    N = w3t.shape[1]

    def full(shape):
        nd = len(shape)
        return pl.BlockSpec(shape, lambda i, _nd=nd: (0,) * _nd)

    return pl.pallas_call(
        _fc_head_kernel,
        out_shape=jax.ShapeDtypeStruct((B, N), jnp.float32),
        grid=(1,),
        in_specs=[full(x.shape), full(w1t.shape), full(b1r.shape),
                  full(w2t.shape), full(b2r.shape),
                  full(w3t.shape), full(b3r.shape)],
        out_specs=full((B, N)),
    )(x, w1t, b1r, w2t, b2r, w3t, b3r)


# ----------------------------------------------------------------------------
# Glue: pool-quadrant im2col (fuses under jit with the surrounding reshapes)
# ----------------------------------------------------------------------------
def im2col_pool_quadrants(x, kh, kw):
    """x: (C, B, H, W) channel-major.

    Returns the 4 im2col matrices (C*kh*kw, B*PH*PW), one per 2x2-pool
    quadrant.  Row order (c, i, j) matches torch's (OC, IC*KH*KW) weight
    flattening; column order is (b, ph, pw), i.e. the pooled CNHW layout.
    """
    C, B, H, W = x.shape
    OH, OW = H - kh + 1, W - kw + 1
    PH, PW = OH // 2, OW // 2
    mats = []
    for p in range(2):
        for q in range(2):
            cols = []
            for i in range(kh):
                for j in range(kw):
                    r0, c0 = p + i, q + j
                    cols.append(x[:, :, r0:r0 + 2 * PH:2, c0:c0 + 2 * PW:2])
            pt = jnp.stack(cols, axis=1)              # (C, kh*kw, B, PH, PW)
            mats.append(pt.reshape(C * kh * kw, B * PH * PW))
    return mats, PH, PW


# ----------------------------------------------------------------------------
# Parameters: raw init (torch-style) + one-time kernel-layout preparation
# ----------------------------------------------------------------------------
def _uniform(key, shape, bound):
    return jax.random.uniform(key, shape, jnp.float32, -bound, bound)


def init_params(key):
    ks = jax.random.split(key, 10)
    p = {}
    fan = 3 * 5 * 5
    p["w1"] = _uniform(ks[0], (6, 3, 5, 5), 1.0 / jnp.sqrt(fan))
    p["b1"] = _uniform(ks[1], (6,), 1.0 / jnp.sqrt(fan))
    fan = 6 * 5 * 5
    p["w2"] = _uniform(ks[2], (16, 6, 5, 5), 1.0 / jnp.sqrt(fan))
    p["b2"] = _uniform(ks[3], (16,), 1.0 / jnp.sqrt(fan))
    p["wf1"] = _uniform(ks[4], (120, 400), 1.0 / jnp.sqrt(400))
    p["bf1"] = _uniform(ks[5], (120,), 1.0 / jnp.sqrt(400))
    p["wf2"] = _uniform(ks[6], (84, 120), 1.0 / jnp.sqrt(120))
    p["bf2"] = _uniform(ks[7], (84,), 1.0 / jnp.sqrt(120))
    p["wf3"] = _uniform(ks[8], (10, 84), 1.0 / jnp.sqrt(84))
    p["bf3"] = _uniform(ks[9], (10,), 1.0 / jnp.sqrt(84))
    return p


def prepare_params(p):
    """One-time reshape/pad/transpose of weights into kernel layout."""
    prep = {}
    # conv1: (6,3,5,5) -> (8,75); OC padded 6->8 on the sublane axis.
    w1 = p["w1"].reshape(6, 3 * 5 * 5)
    prep["w1m"] = jnp.pad(w1, ((0, 2), (0, 0)))
    prep["b1c"] = jnp.pad(p["b1"], (0, 2)).reshape(8, 1)
    # conv2: pad IC 6->8 so it consumes conv1's padded-channel output directly
    # (padded channels are zero, contribute nothing); (16,8,5,5) -> (16,200).
    w2 = jnp.pad(p["w2"], ((0, 0), (0, 2), (0, 0), (0, 0)))
    prep["w2m"] = w2.reshape(16, 8 * 5 * 5)
    prep["b2c"] = p["b2"].reshape(16, 1)
    # FC weights pre-transposed, biases as (1, N) rows.
    prep["wf1t"] = p["wf1"].T
    prep["bf1r"] = p["bf1"].reshape(1, -1)
    prep["wf2t"] = p["wf2"].T
    prep["bf2r"] = p["bf2"].reshape(1, -1)
    prep["wf3t"] = p["wf3"].T
    prep["bf3r"] = p["bf3"].reshape(1, -1)
    return prep


# ----------------------------------------------------------------------------
# Forward pass (3 pallas_calls total: conv1+relu+pool, conv2+relu+pool, FC head)
# ----------------------------------------------------------------------------
def net_forward(prep, x):
    """x: (B, 3, 32, 32) float32 NCHW -> logits (B, 10)."""
    B = x.shape[0]
    xc = jnp.transpose(x, (1, 0, 2, 3))                        # (3, B, 32, 32) CNHW
    p1, ph1, pw1 = im2col_pool_quadrants(xc, 5, 5)             # 4 x (75, B*196)
    y1 = conv_gemm_relu_pool(p1, prep["w1m"], prep["b1c"])     # (8, B*196)
    y1 = y1.reshape(8, B, ph1, pw1)                            # CNHW; chans 6,7 == 0

    p2, ph2, pw2 = im2col_pool_quadrants(y1, 5, 5)             # 4 x (200, B*25)
    y2 = conv_gemm_relu_pool(p2, prep["w2m"], prep["b2c"])     # (16, B*25)
    y2 = y2.reshape(16, B, ph2, pw2)                           # (16, B, 5, 5)

    # torch flatten order (c, h, w): tiny (B*400) reorder, fuses under jit.
    xf = jnp.transpose(y2, (1, 0, 2, 3)).reshape(B, 16 * ph2 * pw2)
    return fc_head(xf, prep["wf1t"], prep["bf1r"], prep["wf2t"],
                   prep["bf2r"], prep["wf3t"], prep["bf3r"])


# ----------------------------------------------------------------------------
# Pure-JAX reference (correctness sanity check)
# ----------------------------------------------------------------------------
def net_forward_ref(params, x):
    def conv(x, w, b):
        y = jax.lax.conv_general_dilated(
            x, w, window_strides=(1, 1), padding="VALID",
            dimension_numbers=("NCHW", "OIHW", "NCHW"))
        return y + b[None, :, None, None]

    def pool(x):
        return jax.lax.reduce_window(
            x, -jnp.inf, jax.lax.max,
            window_dimensions=(1, 1, 2, 2), window_strides=(1, 1, 2, 2),
            padding="VALID")

    x = pool(jax.nn.relu(conv(x, params["w1"], params["b1"])))
    x = pool(jax.nn.relu(conv(x, params["w2"], params["b2"])))
    x = x.reshape(x.shape[0], -1)
    x = jax.nn.relu(x @ params["wf1"].T + params["bf1"])
    x = jax.nn.relu(x @ params["wf2"].T + params["bf2"])
    return x @ params["wf3"].T + params["bf3"]


if __name__ == "__main__":
    key = jax.random.PRNGKey(0)
    k_params, k_x = jax.random.split(key)
    params = init_params(k_params)
    prep = prepare_params(params)

    # Input implied by the module (fc1 expects 16*5*5): batch=2, 3x32x32.
    x = jax.random.normal(k_x, (2, 3, 32, 32), jnp.float32)

    fwd = jax.jit(net_forward)
    out = jax.block_until_ready(fwd(prep, x))
    ref = jax.block_until_ready(net_forward_ref(params, x))

    assert out.shape == (2, 10), out.shape
    max_err = float(jnp.max(jnp.abs(out - ref)))
    assert jnp.allclose(out, ref, atol=2e-4, rtol=2e-4), max_err
    print("KERNEL_OK")
</pallas_src>

<mosaic_0001>
module attributes {stable_mosaic.version = 11 : i64} {
  func.func @_conv_gemm_relu_pool_kernel(%arg0: i32, %arg1: memref<75x392xf32, #tpu.memory_space<vmem>>, %arg2: memref<75x392xf32, #tpu.memory_space<vmem>>, %arg3: memref<75x392xf32, #tpu.memory_space<vmem>>, %arg4: memref<75x392xf32, #tpu.memory_space<vmem>>, %arg5: memref<8x75xf32, #tpu.memory_space<vmem>>, %arg6: memref<8x1xf32, #tpu.memory_space<vmem>>, %arg7: memref<8x392xf32, #tpu.memory_space<vmem>>) attributes {dimension_semantics = [#tpu.dimension_semantics<parallel>], iteration_bounds = array<i64: 1>, scalar_prefetch = 0 : i64, scratch_operands = 0 : i64, tpu.core_type = #tpu.core_type<tc>, window_params = [{transform_indices = @transform_0, window_bounds = array<i64: 75, 392>}, {transform_indices = @transform_1, window_bounds = array<i64: 75, 392>}, {transform_indices = @transform_2, window_bounds = array<i64: 75, 392>}, {transform_indices = @transform_3, window_bounds = array<i64: 75, 392>}, {pipeline_mode = #tpu.pipeline_mode<synchronous>, transform_indices = @transform_4, window_bounds = array<i64: 8, 75>}, {pipeline_mode = #tpu.pipeline_mode<synchronous>, transform_indices = @transform_5, window_bounds = array<i64: 8, 1>}, {transform_indices = @transform_6, window_bounds = array<i64: 8, 392>}]} {
    %c0 = arith.constant 0 : index
    %c0_0 = arith.constant 0 : index
    %0 = vector.load %arg5[%c0, %c0_0] : memref<8x75xf32, #tpu.memory_space<vmem>>, vector<8x75xf32>
    %c0_1 = arith.constant 0 : index
    %c0_2 = arith.constant 0 : index
    %1 = vector.load %arg1[%c0_1, %c0_2] : memref<75x392xf32, #tpu.memory_space<vmem>>, vector<75x392xf32>
    %cst = arith.constant dense<0.000000e+00> : vector<8x392xf32>
    %2 = tpu.matmul %0, %1, %cst {dimension_numbers = #tpu.dot_dimension_numbers<[1], [0], [0], [1], [0, 0, 1, 1], [], []>} : vector<8x75xf32>, vector<75x392xf32>, vector<8x392xf32> -> vector<8x392xf32>
    %c0_3 = arith.constant 0 : index
    %c0_4 = arith.constant 0 : index
    %3 = vector.load %arg2[%c0_3, %c0_4] : memref<75x392xf32, #tpu.memory_space<vmem>>, vector<75x392xf32>
    %cst_5 = arith.constant dense<0.000000e+00> : vector<8x392xf32>
    %4 = tpu.matmul %0, %3, %cst_5 {dimension_numbers = #tpu.dot_dimension_numbers<[1], [0], [0], [1], [0, 0, 1, 1], [], []>} : vector<8x75xf32>, vector<75x392xf32>, vector<8x392xf32> -> vector<8x392xf32>
    %5 = arith.maximumf %2, %4 : vector<8x392xf32>
    %c0_6 = arith.constant 0 : index
    %c0_7 = arith.constant 0 : index
    %6 = vector.load %arg3[%c0_6, %c0_7] : memref<75x392xf32, #tpu.memory_space<vmem>>, vector<75x392xf32>
    %cst_8 = arith.constant dense<0.000000e+00> : vector<8x392xf32>
    %7 = tpu.matmul %0, %6, %cst_8 {dimension_numbers = #tpu.dot_dimension_numbers<[1], [0], [0], [1], [0, 0, 1, 1], [], []>} : vector<8x75xf32>, vector<75x392xf32>, vector<8x392xf32> -> vector<8x392xf32>
    %8 = arith.maximumf %5, %7 : vector<8x392xf32>
    %c0_9 = arith.constant 0 : index
    %c0_10 = arith.constant 0 : index
    %9 = vector.load %arg4[%c0_9, %c0_10] : memref<75x392xf32, #tpu.memory_space<vmem>>, vector<75x392xf32>
    %cst_11 = arith.constant dense<0.000000e+00> : vector<8x392xf32>
    %10 = tpu.matmul %0, %9, %cst_11 {dimension_numbers = #tpu.dot_dimension_numbers<[1], [0], [0], [1], [0, 0, 1, 1], [], []>} : vector<8x75xf32>, vector<75x392xf32>, vector<8x392xf32> -> vector<8x392xf32>
    %11 = arith.maximumf %8, %10 : vector<8x392xf32>
    %c0_12 = arith.constant 0 : index
    %c0_13 = arith.constant 0 : index
    %12 = vector.load %arg6[%c0_12, %c0_13] : memref<8x1xf32, #tpu.memory_space<vmem>>, vector<8x1xf32>
    %13 = vector.broadcast %12 : vector<8x1xf32> to vector<8x392xf32>
    %14 = arith.addf %11, %13 : vector<8x392xf32>
    %cst_14 = arith.constant 0.000000e+00 : f32
    %15 = vector.broadcast %cst_14 : f32 to vector<8x392xf32>
    %16 = arith.maximumf %14, %15 : vector<8x392xf32>
    %c0_15 = arith.constant 0 : index
    %c0_16 = arith.constant 0 : index
    %17 = vector.load %arg7[%c0_15, %c0_16] : memref<8x392xf32, #tpu.memory_space<vmem>>, vector<8x392xf32>
    tpu.vector_store %arg7[%c0_15, %c0_16], %16 {strides = array<i32>} : memref<8x392xf32, #tpu.memory_space<vmem>>, vector<8x392xf32>,
    return
  }
  func.func @transform_0(%arg0: i32) -> (i32, i32) {
    %c0_i32 = arith.constant 0 : i32
    %c0_i32_0 = arith.constant 0 : i32
    return %c0_i32, %arg0 : i32, i32
  }
  func.func @transform_1(%arg0: i32) -> (i32, i32) {
    %c0_i32 = arith.constant 0 : i32
    %c0_i32_0 = arith.constant 0 : i32
    return %c0_i32, %arg0 : i32, i32
  }
  func.func @transform_2(%arg0: i32) -> (i32, i32) {
    %c0_i32 = arith.constant 0 : i32
    %c0_i32_0 = arith.constant 0 : i32
    return %c0_i32, %arg0 : i32, i32
  }
  func.func @transform_3(%arg0: i32) -> (i32, i32) {
    %c0_i32 = arith.constant 0 : i32
    %c0_i32_0 = arith.constant 0 : i32
    return %c0_i32, %arg0 : i32, i32
  }
  func.func @transform_4(%arg0: i32) -> (i32, i32) {
    %c0_i32 = arith.constant 0 : i32
    %c0_i32_0 = arith.constant 0 : i32
    %c0_i32_1 = arith.constant 0 : i32
    return %c0_i32, %c0_i32_0 : i32, i32
  }
  func.func @transform_5(%arg0: i32) -> (i32, i32) {
    %c0_i32 = arith.constant 0 : i32
    %c0_i32_0 = arith.constant 0 : i32
    %c0_i32_1 = arith.constant 0 : i32
    return %c0_i32, %c0_i32_0 : i32, i32
  }
  func.func @transform_6(%arg0: i32) -> (i32, i32) {
    %c0_i32 = arith.constant 0 : i32
    %c0_i32_0 = arith.constant 0 : i32
    return %c0_i32, %arg0 : i32, i32
  }
}

module attributes {stable_mosaic.version = 11 : i64} {
  func.func @_conv_gemm_relu_pool_kernel(%arg0: i32, %arg1: memref<200x50xf32, #tpu.memory_space<vmem>>, %arg2: memref<200x50xf32, #tpu.memory_space<vmem>>, %arg3: memref<200x50xf32, #tpu.memory_space<vmem>>, %arg4: memref<200x50xf32, #tpu.memory_space<vmem>>, %arg5: memref<16x200xf32, #tpu.memory_space<vmem>>, %arg6: memref<16x1xf32, #tpu.memory_space<vmem>>, %arg7: memref<16x50xf32, #tpu.memory_space<vmem>>) attributes {dimension_semantics = [#tpu.dimension_semantics<parallel>], iteration_bounds = array<i64: 1>, scalar_prefetch = 0 : i64, scratch_operands = 0 : i64, tpu.core_type = #tpu.core_type<tc>, window_params = [{transform_indices = @transform_0, window_bounds = array<i64: 200, 50>}, {transform_indices = @transform_1, window_bounds = array<i64: 200, 50>}, {transform_indices = @transform_2, window_bounds = array<i64: 200, 50>}, {transform_indices = @transform_3, window_bounds = array<i64: 200, 50>}, {pipeline_mode = #tpu.pipeline_mode<synchronous>, transform_indices = @transform_4, window_bounds = array<i64: 16, 200>}, {pipeline_mode = #tpu.pipeline_mode<synchronous>, transform_indices = @transform_5, window_bounds = array<i64: 16, 1>}, {transform_indices = @transform_6, window_bounds = array<i64: 16, 50>}]} {
    %c0 = arith.constant 0 : index
    %c0_0 = arith.constant 0 : index
    %0 = vector.load %arg5[%c0, %c0_0] : memref<16x200xf32, #tpu.memory_space<vmem>>, vector<16x200xf32>
    %c0_1 = arith.constant 0 : index
    %c0_2 = arith.constant 0 : index
    %1 = vector.load %arg1[%c0_1, %c0_2] : memref<200x50xf32, #tpu.memory_space<vmem>>, vector<200x50xf32>
    %cst = arith.constant dense<0.000000e+00> : vector<16x50xf32>
    %2 = tpu.matmul %0, %1, %cst {dimension_numbers = #tpu.dot_dimension_numbers<[1], [0], [0], [1], [0, 0, 1, 1], [], []>} : vector<16x200xf32>, vector<200x50xf32>, vector<16x50xf32> -> vector<16x50xf32>
    %c0_3 = arith.constant 0 : index
    %c0_4 = arith.constant 0 : index
    %3 = vector.load %arg2[%c0_3, %c0_4] : memref<200x50xf32, #tpu.memory_space<vmem>>, vector<200x50xf32>
    %cst_5 = arith.constant dense<0.000000e+00> : vector<16x50xf32>
    %4 = tpu.matmul %0, %3, %cst_5 {dimension_numbers = #tpu.dot_dimension_numbers<[1], [0], [0], [1], [0, 0, 1, 1], [], []>} : vector<16x200xf32>, vector<200x50xf32>, vector<16x50xf32> -> vector<16x50xf32>
    %5 = arith.maximumf %2, %4 : vector<16x50xf32>
    %c0_6 = arith.constant 0 : index
    %c0_7 = arith.constant 0 : index
    %6 = vector.load %arg3[%c0_6, %c0_7] : memref<200x50xf32, #tpu.memory_space<vmem>>, vector<200x50xf32>
    %cst_8 = arith.constant dense<0.000000e+00> : vector<16x50xf32>
    %7 = tpu.matmul %0, %6, %cst_8 {dimension_numbers = #tpu.dot_dimension_numbers<[1], [0], [0], [1], [0, 0, 1, 1], [], []>} : vector<16x200xf32>, vector<200x50xf32>, vector<16x50xf32> -> vector<16x50xf32>
    %8 = arith.maximumf %5, %7 : vector<16x50xf32>
    %c0_9 = arith.constant 0 : index
    %c0_10 = arith.constant 0 : index
    %9 = vector.load %arg4[%c0_9, %c0_10] : memref<200x50xf32, #tpu.memory_space<vmem>>, vector<200x50xf32>
    %cst_11 = arith.constant dense<0.000000e+00> : vector<16x50xf32>
    %10 = tpu.matmul %0, %9, %cst_11 {dimension_numbers = #tpu.dot_dimension_numbers<[1], [0], [0], [1], [0, 0, 1, 1], [], []>} : vector<16x200xf32>, vector<200x50xf32>, vector<16x50xf32> -> vector<16x50xf32>
    %11 = arith.maximumf %8, %10 : vector<16x50xf32>
    %c0_12 = arith.constant 0 : index
    %c0_13 = arith.constant 0 : index
    %12 = vector.load %arg6[%c0_12, %c0_13] : memref<16x1xf32, #tpu.memory_space<vmem>>, vector<16x1xf32>
    %13 = vector.broadcast %12 : vector<16x1xf32> to vector<16x50xf32>
    %14 = arith.addf %11, %13 : vector<16x50xf32>
    %cst_14 = arith.constant 0.000000e+00 : f32
    %15 = vector.broadcast %cst_14 : f32 to vector<16x50xf32>
    %16 = arith.maximumf %14, %15 : vector<16x50xf32>
    %c0_15 = arith.constant 0 : index
    %c0_16 = arith.constant 0 : index
    %17 = vector.load %arg7[%c0_15, %c0_16] : memref<16x50xf32, #tpu.memory_space<vmem>>, vector<16x50xf32>
    tpu.vector_store %arg7[%c0_15, %c0_16], %16 {strides = array<i32>} : memref<16x50xf32, #tpu.memory_space<vmem>>, vector<16x50xf32>,
    return
  }
  func.func @transform_0(%arg0: i32) -> (i32, i32) {
    %c0_i32 = arith.constant 0 : i32
    %c0_i32_0 = arith.constant 0 : i32
    return %c0_i32, %arg0 : i32, i32
  }
  func.func @transform_1(%arg0: i32) -> (i32, i32) {
    %c0_i32 = arith.constant 0 : i32
    %c0_i32_0 = arith.constant 0 : i32
    return %c0_i32, %arg0 : i32, i32
  }
  func.func @transform_2(%arg0: i32) -> (i32, i32) {
    %c0_i32 = arith.constant 0 : i32
    %c0_i32_0 = arith.constant 0 : i32
    return %c0_i32, %arg0 : i32, i32
  }
  func.func @transform_3(%arg0: i32) -> (i32, i32) {
    %c0_i32 = arith.constant 0 : i32
    %c0_i32_0 = arith.constant 0 : i32
    return %c0_i32, %arg0 : i32, i32
  }
  func.func @transform_4(%arg0: i32) -> (i32, i32) {
    %c0_i32 = arith.constant 0 : i32
    %c0_i32_0 = arith.constant 0 : i32
    %c0_i32_1 = arith.constant 0 : i32
    return %c0_i32, %c0_i32_0 : i32, i32
  }
  func.func @transform_5(%arg0: i32) -> (i32, i32) {
    %c0_i32 = arith.constant 0 : i32
    %c0_i32_0 = arith.constant 0 : i32
    %c0_i32_1 = arith.constant 0 : i32
    return %c0_i32, %c0_i32_0 : i32, i32
  }
  func.func @transform_6(%arg0: i32) -> (i32, i32) {
    %c0_i32 = arith.constant 0 : i32
    %c0_i32_0 = arith.constant 0 : i32
    return %c0_i32, %arg0 : i32, i32
  }
}

module attributes {stable_mosaic.version = 11 : i64} {
  func.func @_fc_head_kernel(%arg0: i32, %arg1: memref<2x400xf32, #tpu.memory_space<vmem>>, %arg2: memref<400x120xf32, #tpu.memory_space<vmem>>, %arg3: memref<1x120xf32, #tpu.memory_space<vmem>>, %arg4: memref<120x84xf32, #tpu.memory_space<vmem>>, %arg5: memref<1x84xf32, #tpu.memory_space<vmem>>, %arg6: memref<84x10xf32, #tpu.memory_space<vmem>>, %arg7: memref<1x10xf32, #tpu.memory_space<vmem>>, %arg8: memref<2x10xf32, #tpu.memory_space<vmem>>) attributes {dimension_semantics = [#tpu.dimension_semantics<arbitrary>], iteration_bounds = array<i64: 1>, scalar_prefetch = 0 : i64, scratch_operands = 0 : i64, tpu.core_type = #tpu.core_type<tc>, window_params = [{pipeline_mode = #tpu.pipeline_mode<synchronous>, transform_indices = @transform_0, window_bounds = array<i64: 2, 400>}, {pipeline_mode = #tpu.pipeline_mode<synchronous>, transform_indices = @transform_1, window_bounds = array<i64: 400, 120>}, {pipeline_mode = #tpu.pipeline_mode<synchronous>, transform_indices = @transform_2, window_bounds = array<i64: 1, 120>}, {pipeline_mode = #tpu.pipeline_mode<synchronous>, transform_indices = @transform_3, window_bounds = array<i64: 120, 84>}, {pipeline_mode = #tpu.pipeline_mode<synchronous>, transform_indices = @transform_4, window_bounds = array<i64: 1, 84>}, {pipeline_mode = #tpu.pipeline_mode<synchronous>, transform_indices = @transform_5, window_bounds = array<i64: 84, 10>}, {pipeline_mode = #tpu.pipeline_mode<synchronous>, transform_indices = @transform_6, window_bounds = array<i64: 1, 10>}, {pipeline_mode = #tpu.pipeline_mode<synchronous>, transform_indices = @transform_7, window_bounds = array<i64: 2, 10>}]} {
    %c0 = arith.constant 0 : index
    %c0_0 = arith.constant 0 : index
    %0 = vector.load %arg1[%c0, %c0_0] : memref<2x400xf32, #tpu.memory_space<vmem>>, vector<2x400xf32>
    %c0_1 = arith.constant 0 : index
    %c0_2 = arith.constant 0 : index
    %1 = vector.load %arg2[%c0_1, %c0_2] : memref<400x120xf32, #tpu.memory_space<vmem>>, vector<400x120xf32>
    %cst = arith.constant dense<0.000000e+00> : vector<2x120xf32>
    %2 = tpu.matmul %0, %1, %cst {dimension_numbers = #tpu.dot_dimension_numbers<[1], [0], [0], [1], [0, 0, 1, 1], [], []>} : vector<2x400xf32>, vector<400x120xf32>, vector<2x120xf32> -> vector<2x120xf32>
    %c0_3 = arith.constant 0 : index
    %c0_4 = arith.constant 0 : index
    %3 = vector.load %arg3[%c0_3, %c0_4] : memref<1x120xf32, #tpu.memory_space<vmem>>, vector<1x120xf32>
    %4 = vector.broadcast %3 : vector<1x120xf32> to vector<2x120xf32>
    %5 = arith.addf %2, %4 : vector<2x120xf32>
    %cst_5 = arith.constant 0.000000e+00 : f32
    %6 = vector.broadcast %cst_5 : f32 to vector<2x120xf32>
    %7 = arith.maximumf %5, %6 : vector<2x120xf32>
    %c0_6 = arith.constant 0 : index
    %c0_7 = arith.constant 0 : index
    %8 = vector.load %arg4[%c0_6, %c0_7] : memref<120x84xf32, #tpu.memory_space<vmem>>, vector<120x84xf32>
    %cst_8 = arith.constant dense<0.000000e+00> : vector<2x84xf32>
    %9 = tpu.matmul %7, %8, %cst_8 {dimension_numbers = #tpu.dot_dimension_numbers<[1], [0], [0], [1], [0, 0, 1, 1], [], []>} : vector<2x120xf32>, vector<120x84xf32>, vector<2x84xf32> -> vector<2x84xf32>
    %c0_9 = arith.constant 0 : index
    %c0_10 = arith.constant 0 : index
    %10 = vector.load %arg5[%c0_9, %c0_10] : memref<1x84xf32, #tpu.memory_space<vmem>>, vector<1x84xf32>
    %11 = vector.broadcast %10 : vector<1x84xf32> to vector<2x84xf32>
    %12 = arith.addf %9, %11 : vector<2x84xf32>
    %cst_11 = arith.constant 0.000000e+00 : f32
    %13 = vector.broadcast %cst_11 : f32 to vector<2x84xf32>
    %14 = arith.maximumf %12, %13 : vector<2x84xf32>
    %c0_12 = arith.constant 0 : index
    %c0_13 = arith.constant 0 : index
    %15 = vector.load %arg6[%c0_12, %c0_13] : memref<84x10xf32, #tpu.memory_space<vmem>>, vector<84x10xf32>
    %cst_14 = arith.constant dense<0.000000e+00> : vector<2x10xf32>
    %16 = tpu.matmul %14, %15, %cst_14 {dimension_numbers = #tpu.dot_dimension_numbers<[1], [0], [0], [1], [0, 0, 1, 1], [], []>} : vector<2x84xf32>, vector<84x10xf32>, vector<2x10xf32> -> vector<2x10xf32>
    %c0_15 = arith.constant 0 : index
    %c0_16 = arith.constant 0 : index
    %17 = vector.load %arg7[%c0_15, %c0_16] : memref<1x10xf32, #tpu.memory_space<vmem>>, vector<1x10xf32>
    %18 = vector.broadcast %17 : vector<1x10xf32> to vector<2x10xf32>
    %19 = arith.addf %16, %18 : vector<2x10xf32>
    %c0_17 = arith.constant 0 : index
    %c0_18 = arith.constant 0 : index
    %20 = vector.load %arg8[%c0_17, %c0_18] : memref<2x10xf32, #tpu.memory_space<vmem>>, vector<2x10xf32>
    tpu.vector_store %arg8[%c0_17, %c0_18], %19 {strides = array<i32>} : memref<2x10xf32, #tpu.memory_space<vmem>>, vector<2x10xf32>,
    return
  }
  func.func @transform_0(%arg0: i32) -> (i32, i32) {
    %c0_i32 = arith.constant 0 : i32
    %c0_i32_0 = arith.constant 0 : i32
    %c0_i32_1 = arith.constant 0 : i32
    return %c0_i32, %c0_i32_0 : i32, i32
  }
  func.func @transform_1(%arg0: i32) -> (i32, i32) {
    %c0_i32 = arith.constant 0 : i32
    %c0_i32_0 = arith.constant 0 : i32
    %c0_i32_1 = arith.constant 0 : i32
    return %c0_i32, %c0_i32_0 : i32, i32
  }
  func.func @transform_2(%arg0: i32) -> (i32, i32) {
    %c0_i32 = arith.constant 0 : i32
    %c0_i32_0 = arith.constant 0 : i32
    %c0_i32_1 = arith.constant 0 : i32
    return %c0_i32, %c0_i32_0 : i32, i32
  }
  func.func @transform_3(%arg0: i32) -> (i32, i32) {
    %c0_i32 = arith.constant 0 : i32
    %c0_i32_0 = arith.constant 0 : i32
    %c0_i32_1 = arith.constant 0 : i32
    return %c0_i32, %c0_i32_0 : i32, i32
  }
  func.func @transform_4(%arg0: i32) -> (i32, i32) {
    %c0_i32 = arith.constant 0 : i32
    %c0_i32_0 = arith.constant 0 : i32
    %c0_i32_1 = arith.constant 0 : i32
    return %c0_i32, %c0_i32_0 : i32, i32
  }
  func.func @transform_5(%arg0: i32) -> (i32, i32) {
    %c0_i32 = arith.constant 0 : i32
    %c0_i32_0 = arith.constant 0 : i32
    %c0_i32_1 = arith.constant 0 : i32
    return %c0_i32, %c0_i32_0 : i32, i32
  }
  func.func @transform_6(%arg0: i32) -> (i32, i32) {
    %c0_i32 = arith.constant 0 : i32
    %c0_i32_0 = arith.constant 0 : i32
    %c0_i32_1 = arith.constant 0 : i32
    return %c0_i32, %c0_i32_0 : i32, i32
  }
  func.func @transform_7(%arg0: i32) -> (i32, i32) {
    %c0_i32 = arith.constant 0 : i32
    %c0_i32_0 = arith.constant 0 : i32
    %c0_i32_1 = arith.constant 0 : i32
    return %c0_i32, %c0_i32_0 : i32, i32
  }
}

</mosaic_0001>

<llo_original>
// kernel: net_forward.3
$region0: #{net_forward.3}
  #allocation0 [shape = 'u32[]', space=smem, size = 0x4, offset = 0x4, fixed_abs, tag = 'smem constant byte address 0x4 - core index']
  #allocation1 [shape = 'u32[72,128]{1,0:T(1,128)}', space=vmem, size = 0x9000, scoped, tag = 'internal scratch']
  %s0 = inlined_call_operand.vmem [shape: f32[75,392], index: 0, kind: input, shape index: {}]
  %s1 = inlined_call_operand.vmem [shape: f32[75,392], index: 1, kind: input, shape index: {}]
  %s2 = inlined_call_operand.vmem [shape: f32[75,392], index: 2, kind: input, shape index: {}]
  %s3 = inlined_call_operand.vmem [shape: f32[75,392], index: 3, kind: input, shape index: {}]
  %s4 = inlined_call_operand.vmem [shape: f32[8,75], index: 4, kind: input, shape index: {}]
  %s5 = inlined_call_operand.vmem [shape: f32[8,1], index: 5, kind: input, shape index: {}]
  %s6 = inlined_call_operand.vmem [shape: f32[8,392], index: 6, kind: output, shape index: {}]
  %s7 = sld [smem:[#allocation0]]
  $region34: #{net_forward.3} parent=0
    _
  %s9 = ssub.s32 1, %s7
  %s10 = scalar_select 0, %s9, %s7
  // Predicated region
  $region2: #{net_forward.3} parent=0 // pred_check
    _
  $region3: #{net_forward.3} parent=0 // pred_check_branch
    %12 = sbr.rel (0) target = $region5
  $region4: #{net_forward.3} parent=0 // pred_region
    _
  $region5: #{net_forward.3} parent=0 // pred_fallthru
    _
  // Predicated region
  $region6: #{net_forward.3} parent=0 // pred_check
    _
  $region7: #{net_forward.3} parent=0 // pred_check_branch
    %14 = sbr.rel (0) target = $region9
  $region8: #{net_forward.3} parent=0 // pred_region
    _
  $region9: #{net_forward.3} parent=0 // pred_fallthru
    _
  // Predicated region
  $region10: #{net_forward.3} parent=0 // pred_check
    _
  $region11: #{net_forward.3} parent=0 // pred_check_branch
    %16 = sbr.rel (0) target = $region13
  $region12: #{net_forward.3} parent=0 // pred_region
    _
  $region13: #{net_forward.3} parent=0 // pred_fallthru
    _
  // Predicated region
  $region14: #{net_forward.3} parent=0 // pred_check
    _
  $region15: #{net_forward.3} parent=0 // pred_check_branch
    %18 = sbr.rel (0) target = $region17
  $region16: #{net_forward.3} parent=0 // pred_region
    _
  $region17: #{net_forward.3} parent=0 // pred_fallthru
    _
  // Predicated region
  $region18: #{net_forward.3} parent=0 // pred_check
    _
  $region19: #{net_forward.3} parent=0 // pred_check_branch
    %20 = sbr.rel (0) target = $region21
  $region20: #{net_forward.3} parent=0 // pred_region
    _
  $region21: #{net_forward.3} parent=0 // pred_fallthru
    _
  // Predicated region
  $region22: #{net_forward.3} parent=0 // pred_check
    _
  $region23: #{net_forward.3} parent=0 // pred_check_branch
    %22 = sbr.rel (0) target = $region25
  $region24: #{net_forward.3} parent=0 // pred_region
    _
  $region25: #{net_forward.3} parent=0 // pred_fallthru
    _
  %v23 = vld [vmem:[%s4] sm:$0xff]
  %v24 = vld [vmem:[%s0] sm:$0xff]
  %v25 = vld [vmem:[%s0 + $0x8] sm:$0xff]
  %v26 = vld [vmem:[%s0 + $0x10] sm:$0xff]
  %v27 = vld [vmem:[%s0 + $0x18] sm:$0xff]
  %v28 = vld [vmem:[%s0 + $0x20] sm:$0xff]
  %v29 = vld [vmem:[%s0 + $0x28] sm:$0xff]
  %v30 = vld [vmem:[%s0 + $0x30] sm:$0xff]
  %v31 = vld [vmem:[%s0 + $0x38] sm:$0xff]
  %v32 = vld [vmem:[%s0 + $0x40] sm:$0xff]
  %v33 = vld [vmem:[%s0 + $0x48] sm:$0xff]
  %v34 = vld [vmem:[%s0 + $0x50] sm:$0xff]
  %v35 = vld [vmem:[%s0 + $0x58] sm:$0xff]
  %v36 = vld [vmem:[%s0 + $0x60] sm:$0xff]
  %v37 = vld [vmem:[%s0 + $0x68] sm:$0xff]
  %v38 = vld [vmem:[%s0 + $0x70] sm:$0xff]
  %v39 = vld [vmem:[%s0 + $0x78] sm:$0xff]
  %v40 = vld [vmem:[%s0 + $0x80] sm:$0xff]
  %v41 = vld [vmem:[%s0 + $0x88] sm:$0xff]
  %v42 = vld [vmem:[%s0 + $0x90] sm:$0xff]
  %v43 = vld [vmem:[%s0 + $0x98] sm:$0xff]
  %v44 = vld [vmem:[%s0 + $0xa0] sm:$0xff]
  %v45 = vld [vmem:[%s0 + $0xa8] sm:$0xff]
  %v46 = vld [vmem:[%s0 + $0xb0] sm:$0xff]
  %v47 = vld [vmem:[%s0 + $0xb8] sm:$0xff]
  %v48 = vld [vmem:[%s0 + $0xc0] sm:$0xff]
  %v49 = vld [vmem:[%s0 + $0xc8] sm:$0xff]
  %v50 = vld [vmem:[%s0 + $0xd0] sm:$0xff]
  %v51 = vld [vmem:[%s0 + $0xd8] sm:$0xff]
  %v52 = vld [vmem:[%s0 + $0xe0] sm:$0xff]
  %v53 = vld [vmem:[%s0 + $0xe8] sm:$0xff]
  %v54 = vld [vmem:[%s0 + $0xf0] sm:$0xff]
  %v55 = vld [vmem:[%s0 + $0xf8] sm:$0xff]
  %v56 = vld [vmem:[%s0 + $0x100] sm:$0xff]
  %v57 = vld [vmem:[%s0 + $0x108] sm:$0xff]
  %v58 = vld [vmem:[%s0 + $0x110] sm:$0xff]
  %v59 = vld [vmem:[%s0 + $0x118] sm:$0xff]
  %v60 = vld [vmem:[%s0 + $0x120] sm:$0x7]
  %v61 = vld [vmem:[%s0 + $0x128] sm:$0x7]
  %v62 = vld [vmem:[%s0 + $0x130] sm:$0x7]
  %v63 = vld [vmem:[%s0 + $0x138] sm:$0x7]
  %vm64 = vcmask 613376
  %v66 = vsel %vm64, %v23, 0
  %vm68 = vcmask 1042432
  %v70 = vsel %vm68, %v60, 0
  %v73 = vsel %vm68, %v61, 0
  %v76 = vsel %vm68, %v62, 0
  %v79 = vsel %vm68, %v63, 0
  %81 = vmatpush.msra.mxu0 0.0
  %82 = vmatpush.msra.mxu0 0.0
  %83 = vmatpush.msra.mxu0 0.0
  %84 = vmatpush.msra.mxu0 0.0
  %85 = vmatpush.msra.mxu0 0.0
  %86 = vmatpush.msra.mxu0 0.0
  %87 = vmatpush.msra.mxu0 %v70
  %88 = vmatpush.msra.mxu0 %v56
  %89 = vmatpush.msra.mxu0 %v52
  %90 = vmatpush.msra.mxu0 %v48
  %91 = vmatpush.msra.mxu0 %v44
  %92 = vmatpush.msra.mxu0 %v40
  %93 = vmatpush.msra.mxu0 %v36
  %94 = vmatpush.msra.mxu0 %v32
  %95 = vmatpush.msra.mxu0 %v28
  %96 = vmatpush.msra.mxu0 %v24
  %97 = vmatmul.f32.gmra.mxu0 %v66
  %v98 = vpop.f32.mrf.mxu0
  %v99 = vadd.f32 0.0, %v98
  %100 = vdwg.mxu0
  %101 = vmatpush.msra.mxu0 0.0
  %102 = vmatpush.msra.mxu0 0.0
  %103 = vmatpush.msra.mxu0 0.0
  %104 = vmatpush.msra.mxu0 0.0
  %105 = vmatpush.msra.mxu0 0.0
  %106 = vmatpush.msra.mxu0 0.0
  %107 = vmatpush.msra.mxu0 %v73
  %108 = vmatpush.msra.mxu0 %v57
  %109 = vmatpush.msra.mxu0 %v53
  %110 = vmatpush.msra.mxu0 %v49
  %111 = vmatpush.msra.mxu0 %v45
  %112 = vmatpush.msra.mxu0 %v41
  %113 = vmatpush.msra.mxu0 %v37
  %114 = vmatpush.msra.mxu0 %v33
  %115 = vmatpush.msra.mxu0 %v29
  %116 = vmatpush.msra.mxu0 %v25
  %117 = vmatmul.f32.gmra.mxu0 %v66
  %v118 = vpop.f32.mrf.mxu0
  %v119 = vadd.f32 0.0, %v118
  %120 = vdwg.mxu0
  %121 = vmatpush.msra.mxu0 0.0
  %122 = vmatpush.msra.mxu0 0.0
  %123 = vmatpush.msra.mxu0 0.0
  %124 = vmatpush.msra.mxu0 0.0
  %125 = vmatpush.msra.mxu0 0.0
  %126 = vmatpush.msra.mxu0 0.0
  %127 = vmatpush.msra.mxu0 %v76
  %128 = vmatpush.msra.mxu0 %v58
  %129 = vmatpush.msra.mxu0 %v54
  %130 = vmatpush.msra.mxu0 %v50
  %131 = vmatpush.msra.mxu0 %v46
  %132 = vmatpush.msra.mxu0 %v42
  %133 = vmatpush.msra.mxu0 %v38
  %134 = vmatpush.msra.mxu0 %v34
  %135 = vmatpush.msra.mxu0 %v30
  %136 = vmatpush.msra.mxu0 %v26
  %137 = vmatmul.f32.gmra.mxu0 %v66
  %v138 = vpop.f32.mrf.mxu0
  %v139 = vadd.f32 0.0, %v138
  %140 = vdwg.mxu0
  %141 = vmatpush.msra.mxu0 0.0
  %142 = vmatpush.msra.mxu0 0.0
  %143 = vmatpush.msra.mxu0 0.0
  %144 = vmatpush.msra.mxu0 0.0
  %145 = vmatpush.msra.mxu0 0.0
  %146 = vmatpush.msra.mxu0 0.0
  %147 = vmatpush.msra.mxu0 %v79
  %148 = vmatpush.msra.mxu0 %v59
  %149 = vmatpush.msra.mxu0 %v55
  %150 = vmatpush.msra.mxu0 %v51
  %151 = vmatpush.msra.mxu0 %v47
  %152 = vmatpush.msra.mxu0 %v43
  %153 = vmatpush.msra.mxu0 %v39
  %154 = vmatpush.msra.mxu0 %v35
  %155 = vmatpush.msra.mxu0 %v31
  %156 = vmatpush.msra.mxu0 %v27
  %157 = vmatmul.f32.gmra.mxu0 %v66
  %v158 = vpop.f32.mrf.mxu0
  %v159 = vadd.f32 0.0, %v158
  %160 = vdwg.mxu0
  %v161 = vld [vmem:[%s1] sm:$0xff]
  %v162 = vld [vmem:[%s1 + $0x8] sm:$0xff]
  %v163 = vld [vmem:[%s1 + $0x10] sm:$0xff]
  %v164 = vld [vmem:[%s1 + $0x18] sm:$0xff]
  %v165 = vld [vmem:[%s1 + $0x20] sm:$0xff]
  %v166 = vld [vmem:[%s1 + $0x28] sm:$0xff]
  %v167 = vld [vmem:[%s1 + $0x30] sm:$0xff]
  %v168 = vld [vmem:[%s1 + $0x38] sm:$0xff]
  %v169 = vld [vmem:[%s1 + $0x40] sm:$0xff]
  %v170 = vld [vmem:[%s1 + $0x48] sm:$0xff]
  %v171 = vld [vmem:[%s1 + $0x50] sm:$0xff]
  %v172 = vld [vmem:[%s1 + $0x58] sm:$0xff]
  %v173 = vld [vmem:[%s1 + $0x60] sm:$0xff]
  %v174 = vld [vmem:[%s1 + $0x68] sm:$0xff]
  %v175 = vld [vmem:[%s1 + $0x70] sm:$0xff]
  %v176 = vld [vmem:[%s1 + $0x78] sm:$0xff]
  %v177 = vld [vmem:[%s1 + $0x80] sm:$0xff]
  %v178 = vld [vmem:[%s1 + $0x88] sm:$0xff]
  %v179 = vld [vmem:[%s1 + $0x90] sm:$0xff]
  %v180 = vld [vmem:[%s1 + $0x98] sm:$0xff]
  %v181 = vld [vmem:[%s1 + $0xa0] sm:$0xff]
  %v182 = vld [vmem:[%s1 + $0xa8] sm:$0xff]
  %v183 = vld [vmem:[%s1 + $0xb0] sm:$0xff]
  %v184 = vld [vmem:[%s1 + $0xb8] sm:$0xff]
  %v185 = vld [vmem:[%s1 + $0xc0] sm:$0xff]
  %v186 = vld [vmem:[%s1 + $0xc8] sm:$0xff]
  %v187 = vld [vmem:[%s1 + $0xd0] sm:$0xff]
  %v188 = vld [vmem:[%s1 + $0xd8] sm:$0xff]
  %v189 = vld [vmem:[%s1 + $0xe0] sm:$0xff]
  %v190 = vld [vmem:[%s1 + $0xe8] sm:$0xff]
  %v191 = vld [vmem:[%s1 + $0xf0] sm:$0xff]
  %v192 = vld [vmem:[%s1 + $0xf8] sm:$0xff]
  %v193 = vld [vmem:[%s1 + $0x100] sm:$0xff]
  %v194 = vld [vmem:[%s1 + $0x108] sm:$0xff]
  %v195 = vld [vmem:[%s1 + $0x110] sm:$0xff]
  %v196 = vld [vmem:[%s1 + $0x118] sm:$0xff]
  %v197 = vld [vmem:[%s1 + $0x120] sm:$0x7]
  %v198 = vld [vmem:[%s1 + $0x128] sm:$0x7]
  %v199 = vld [vmem:[%s1 + $0x130] sm:$0x7]
  %v200 = vld [vmem:[%s1 + $0x138] sm:$0x7]
  %v202 = vsel %vm68, %v197, 0
  %v205 = vsel %vm68, %v198, 0
  %v208 = vsel %vm68, %v199, 0
  %v211 = vsel %vm68, %v200, 0
  %213 = vmatpush.msra.mxu0 0.0
  %214 = vmatpush.msra.mxu0 0.0
  %215 = vmatpush.msra.mxu0 0.0
  %216 = vmatpush.msra.mxu0 0.0
  %217 = vmatpush.msra.mxu0 0.0
  %218 = vmatpush.msra.mxu0 0.0
  %219 = vmatpush.msra.mxu0 %v202
  %220 = vmatpush.msra.mxu0 %v193
  %221 = vmatpush.msra.mxu0 %v189
  %222 = vmatpush.msra.mxu0 %v185
  %223 = vmatpush.msra.mxu0 %v181
  %224 = vmatpush.msra.mxu0 %v177
  %225 = vmatpush.msra.mxu0 %v173
  %226 = vmatpush.msra.mxu0 %v169
  %227 = vmatpush.msra.mxu0 %v165
  %228 = vmatpush.msra.mxu0 %v161
  %229 = vmatmul.f32.gmra.mxu0 %v66
  %v230 = vpop.f32.mrf.mxu0
  %v231 = vadd.f32 0.0, %v230
  %232 = vdwg.mxu0
  %233 = vmatpush.msra.mxu0 0.0
  %234 = vmatpush.msra.mxu0 0.0
  %235 = vmatpush.msra.mxu0 0.0
  %236 = vmatpush.msra.mxu0 0.0
  %237 = vmatpush.msra.mxu0 0.0
  %238 = vmatpush.msra.mxu0 0.0
  %239 = vmatpush.msra.mxu0 %v205
  %240 = vmatpush.msra.mxu0 %v194
  %241 = vmatpush.msra.mxu0 %v190
  %242 = vmatpush.msra.mxu0 %v186
  %243 = vmatpush.msra.mxu0 %v182
  %244 = vmatpush.msra.mxu0 %v178
  %245 = vmatpush.msra.mxu0 %v174
  %246 = vmatpush.msra.mxu0 %v170
  %247 = vmatpush.msra.mxu0 %v166
  %248 = vmatpush.msra.mxu0 %v162
  %249 = vmatmul.f32.gmra.mxu0 %v66
  %v250 = vpop.f32.mrf.mxu0
  %v251 = vadd.f32 0.0, %v250
  %252 = vdwg.mxu0
  %253 = vmatpush.msra.mxu0 0.0
  %254 = vmatpush.msra.mxu0 0.0
  %255 = vmatpush.msra.mxu0 0.0
  %256 = vmatpush.msra.mxu0 0.0
  %257 = vmatpush.msra.mxu0 0.0
  %258 = vmatpush.msra.mxu0 0.0
  %259 = vmatpush.msra.mxu0 %v208
  %260 = vmatpush.msra.mxu0 %v195
  %261 = vmatpush.msra.mxu0 %v191
  %262 = vmatpush.msra.mxu0 %v187
  %263 = vmatpush.msra.mxu0 %v183
  %264 = vmatpush.msra.mxu0 %v179
  %265 = vmatpush.msra.mxu0 %v175
  %266 = vmatpush.msra.mxu0 %v171
  %267 = vmatpush.msra.mxu0 %v167
  %268 = vmatpush.msra.mxu0 %v163
  %269 = vmatmul.f32.gmra.mxu0 %v66
  %v270 = vpop.f32.mrf.mxu0
  %v271 = vadd.f32 0.0, %v270
  %272 = vdwg.mxu0
  %273 = vmatpush.msra.mxu0 0.0
  %274 = vmatpush.msra.mxu0 0.0
  %275 = vmatpush.msra.mxu0 0.0
  %276 = vmatpush.msra.mxu0 0.0
  %277 = vmatpush.msra.mxu0 0.0
  %278 = vmatpush.msra.mxu0 0.0
  %279 = vmatpush.msra.mxu0 %v211
  %280 = vmatpush.msra.mxu0 %v196
  %281 = vmatpush.msra.mxu0 %v192
  %282 = vmatpush.msra.mxu0 %v188
  %283 = vmatpush.msra.mxu0 %v184
  %284 = vmatpush.msra.mxu0 %v180
  %285 = vmatpush.msra.mxu0 %v176
  %286 = vmatpush.msra.mxu0 %v172
  %287 = vmatpush.msra.mxu0 %v168
  %288 = vmatpush.msra.mxu0 %v164
  %289 = vmatmul.f32.gmra.mxu0 %v66
  %v290 = vpop.f32.mrf.mxu0
  %v291 = vadd.f32 0.0, %v290
  %292 = vdwg.mxu0
  %v293 = vmax.f32 %v99, %v231
  %v294 = vmax.f32 %v119, %v251
  %v295 = vmax.f32 %v139, %v271
  %v296 = vmax.f32 %v159, %v291
  %v297 = vld [vmem:[%s2] sm:$0xff]
  %v298 = vld [vmem:[%s2 + $0x8] sm:$0xff]
  %v299 = vld [vmem:[%s2 + $0x10] sm:$0xff]
  %v300 = vld [vmem:[%s2 + $0x18] sm:$0xff]
  %v301 = vld [vmem:[%s2 + $0x20] sm:$0xff]
  %v302 = vld [vmem:[%s2 + $0x28] sm:$0xff]
  %v303 = vld [vmem:[%s2 + $0x30] sm:$0xff]
  %v304 = vld [vmem:[%s2 + $0x38] sm:$0xff]
  %v305 = vld [vmem:[%s2 + $0x40] sm:$0xff]
  %v306 = vld [vmem:[%s2 + $0x48] sm:$0xff]
  %v307 = vld [vmem:[%s2 + $0x50] sm:$0xff]
  %v308 = vld [vmem:[%s2 + $0x58] sm:$0xff]
  %v309 = vld [vmem:[%s2 + $0x60] sm:$0xff]
  %v310 = vld [vmem:[%s2 + $0x68] sm:$0xff]
  %v311 = vld [vmem:[%s2 + $0x70] sm:$0xff]
  %v312 = vld [vmem:[%s2 + $0x78] sm:$0xff]
  %v313 = vld [vmem:[%s2 + $0x80] sm:$0xff]
  %v314 = vld [vmem:[%s2 + $0x88] sm:$0xff]
  %v315 = vld [vmem:[%s2 + $0x90] sm:$0xff]
  %v316 = vld [vmem:[%s2 + $0x98] sm:$0xff]
  %v317 = vld [vmem:[%s2 + $0xa0] sm:$0xff]
  %v318 = vld [vmem:[%s2 + $0xa8] sm:$0xff]
  %v319 = vld [vmem:[%s2 + $0xb0] sm:$0xff]
  %v320 = vld [vmem:[%s2 + $0xb8] sm:$0xff]
  %v321 = vld [vmem:[%s2 + $0xc0] sm:$0xff]
  %v322 = vld [vmem:[%s2 + $0xc8] sm:$0xff]
  %v323 = vld [vmem:[%s2 + $0xd0] sm:$0xff]
  %v324 = vld [vmem:[%s2 + $0xd8] sm:$0xff]
  %v325 = vld [vmem:[%s2 + $0xe0] sm:$0xff]
  %v326 = vld [vmem:[%s2 + $0xe8] sm:$0xff]
  %v327 = vld [vmem:[%s2 + $0xf0] sm:$0xff]
  %v328 = vld [vmem:[%s2 + $0xf8] sm:$0xff]
  %v329 = vld [vmem:[%s2 + $0x100] sm:$0xff]
  %v330 = vld [vmem:[%s2 + $0x108] sm:$0xff]
  %v331 = vld [vmem:[%s2 + $0x110] sm:$0xff]
  %v332 = vld [vmem:[%s2 + $0x118] sm:$0xff]
  %v333 = vld [vmem:[%s2 + $0x120] sm:$0x7]
  %v334 = vld [vmem:[%s2 + $0x128] sm:$0x7]
  %v335 = vld [vmem:[%s2 + $0x130] sm:$0x7]
  %v336 = vld [vmem:[%s2 + $0x138] sm:$0x7]
  %v338 = vsel %vm68, %v333, 0
  %v341 = vsel %vm68, %v334, 0
  %v344 = vsel %vm68, %v335, 0
  %v347 = vsel %vm68, %v336, 0
  %349 = vmatpush.msra.mxu0 0.0
  %350 = vmatpush.msra.mxu0 0.0
  %351 = vmatpush.msra.mxu0 0.0
  %352 = vmatpush.msra.mxu0 0.0
  %353 = vmatpush.msra.mxu0 0.0
  %354 = vmatpush.msra.mxu0 0.0
  %355 = vmatpush.msra.mxu0 %v338
  %356 = vmatpush.msra.mxu0 %v329
  %357 = vmatpush.msra.mxu0 %v325
  %358 = vmatpush.msra.mxu0 %v321
  %359 = vmatpush.msra.mxu0 %v317
  %360 = vmatpush.msra.mxu0 %v313
  %361 = vmatpush.msra.mxu0 %v309
  %362 = vmatpush.msra.mxu0 %v305
  %363 = vmatpush.msra.mxu0 %v301
  %364 = vmatpush.msra.mxu0 %v297
  %365 = vmatmul.f32.gmra.mxu0 %v66
  %v366 = vpop.f32.mrf.mxu0
  %v367 = vadd.f32 0.0, %v366
  %368 = vdwg.mxu0
  %369 = vmatpush.msra.mxu0 0.0
  %370 = vmatpush.msra.mxu0 0.0
  %371 = vmatpush.msra.mxu0 0.0
  %372 = vmatpush.msra.mxu0 0.0
  %373 = vmatpush.msra.mxu0 0.0
  %374 = vmatpush.msra.mxu0 0.0
  %375 = vmatpush.msra.mxu0 %v341
  %376 = vmatpush.msra.mxu0 %v330
  %377 = vmatpush.msra.mxu0 %v326
  %378 = vmatpush.msra.mxu0 %v322
  %379 = vmatpush.msra.mxu0 %v318
  %380 = vmatpush.msra.mxu0 %v314
  %381 = vmatpush.msra.mxu0 %v310
  %382 = vmatpush.msra.mxu0 %v306
  %383 = vmatpush.msra.mxu0 %v302
  %384 = vmatpush.msra.mxu0 %v298
  %385 = vmatmul.f32.gmra.mxu0 %v66
  %v386 = vpop.f32.mrf.mxu0
  %v387 = vadd.f32 0.0, %v386
  %388 = vdwg.mxu0
  %389 = vmatpush.msra.mxu0 0.0
  %390 = vmatpush.msra.mxu0 0.0
  %391 = vmatpush.msra.mxu0 0.0
  %392 = vmatpush.msra.mxu0 0.0
  %393 = vmatpush.msra.mxu0 0.0
  %394 = vmatpush.msra.mxu0 0.0
  %395 = vmatpush.msra.mxu0 %v344
  %396 = vmatpush.msra.mxu0 %v331
  %397 = vmatpush.msra.mxu0 %v327
  %398 = vmatpush.msra.mxu0 %v323
  %399 = vmatpush.msra.mxu0 %v319
  %400 = vmatpush.msra.mxu0 %v315
  %401 = vmatpush.msra.mxu0 %v311
  %402 = vmatpush.msra.mxu0 %v307
  %403 = vmatpush.msra.mxu0 %v303
  %404 = vmatpush.msra.mxu0 %v299
  %405 = vmatmul.f32.gmra.mxu0 %v66
  %v406 = vpop.f32.mrf.mxu0
  %v407 = vadd.f32 0.0, %v406
  %408 = vdwg.mxu0
  %409 = vmatpush.msra.mxu0 0.0
  %410 = vmatpush.msra.mxu0 0.0
  %411 = vmatpush.msra.mxu0 0.0
  %412 = vmatpush.msra.mxu0 0.0
  %413 = vmatpush.msra.mxu0 0.0
  %414 = vmatpush.msra.mxu0 0.0
  %415 = vmatpush.msra.mxu0 %v347
  %416 = vmatpush.msra.mxu0 %v332
  %417 = vmatpush.msra.mxu0 %v328
  %418 = vmatpush.msra.mxu0 %v324
  %419 = vmatpush.msra.mxu0 %v320
  %420 = vmatpush.msra.mxu0 %v316
  %421 = vmatpush.msra.mxu0 %v312
  %422 = vmatpush.msra.mxu0 %v308
  %423 = vmatpush.msra.mxu0 %v304
  %424 = vmatpush.msra.mxu0 %v300
  %425 = vmatmul.f32.gmra.mxu0 %v66
  %v426 = vpop.f32.mrf.mxu0
  %v427 = vadd.f32 0.0, %v426
  %428 = vdwg.mxu0
  %v429 = vmax.f32 %v293, %v367
  %v430 = vmax.f32 %v294, %v387
  %v431 = vmax.f32 %v295, %v407
  %v432 = vmax.f32 %v296, %v427
  %v433 = vld [vmem:[%s3] sm:$0xff]
  %v434 = vld [vmem:[%s3 + $0x8] sm:$0xff]
  %v435 = vld [vmem:[%s3 + $0x10] sm:$0xff]
  %v436 = vld [vmem:[%s3 + $0x18] sm:$0xff]
  %v437 = vld [vmem:[%s3 + $0x20] sm:$0xff]
  %v438 = vld [vmem:[%s3 + $0x28] sm:$0xff]
  %v439 = vld [vmem:[%s3 + $0x30] sm:$0xff]
  %v440 = vld [vmem:[%s3 + $0x38] sm:$0xff]
  %v441 = vld [vmem:[%s3 + $0x40] sm:$0xff]
  %v442 = vld [vmem:[%s3 + $0x48] sm:$0xff]
  %v443 = vld [vmem:[%s3 + $0x50] sm:$0xff]
  %v444 = vld [vmem:[%s3 + $0x58] sm:$0xff]
  %v445 = vld [vmem:[%s3 + $0x60] sm:$0xff]
  %v446 = vld [vmem:[%s3 + $0x68] sm:$0xff]
  %v447 = vld [vmem:[%s3 + $0x70] sm:$0xff]
  %v448 = vld [vmem:[%s3 + $0x78] sm:$0xff]
  %v449 = vld [vmem:[%s3 + $0x80] sm:$0xff]
  %v450 = vld [vmem:[%s3 + $0x88] sm:$0xff]
  %v451 = vld [vmem:[%s3 + $0x90] sm:$0xff]
  %v452 = vld [vmem:[%s3 + $0x98] sm:$0xff]
  %v453 = vld [vmem:[%s3 + $0xa0] sm:$0xff]
  %v454 = vld [vmem:[%s3 + $0xa8] sm:$0xff]
  %v455 = vld [vmem:[%s3 + $0xb0] sm:$0xff]
  %v456 = vld [vmem:[%s3 + $0xb8] sm:$0xff]
  %v457 = vld [vmem:[%s3 + $0xc0] sm:$0xff]
  %v458 = vld [vmem:[%s3 + $0xc8] sm:$0xff]
  %v459 = vld [vmem:[%s3 + $0xd0] sm:$0xff]
  %v460 = vld [vmem:[%s3 + $0xd8] sm:$0xff]
  %v461 = vld [vmem:[%s3 + $0xe0] sm:$0xff]
  %v462 = vld [vmem:[%s3 + $0xe8] sm:$0xff]
  %v463 = vld [vmem:[%s3 + $0xf0] sm:$0xff]
  %v464 = vld [vmem:[%s3 + $0xf8] sm:$0xff]
  %v465 = vld [vmem:[%s3 + $0x100] sm:$0xff]
  %v466 = vld [vmem:[%s3 + $0x108] sm:$0xff]
  %v467 = vld [vmem:[%s3 + $0x110] sm:$0xff]
  %v468 = vld [vmem:[%s3 + $0x118] sm:$0xff]
  %v469 = vld [vmem:[%s3 + $0x120] sm:$0x7]
  %v470 = vld [vmem:[%s3 + $0x128] sm:$0x7]
  %v471 = vld [vmem:[%s3 + $0x130] sm:$0x7]
  %v472 = vld [vmem:[%s3 + $0x138] sm:$0x7]
  %v474 = vsel %vm68, %v469, 0
  %v477 = vsel %vm68, %v470, 0
  %v480 = vsel %vm68, %v471, 0
  %v483 = vsel %vm68, %v472, 0
  %485 = vmatpush.msra.mxu0 0.0
  %486 = vmatpush.msra.mxu0 0.0
  %487 = vmatpush.msra.mxu0 0.0
  %488 = vmatpush.msra.mxu0 0.0
  %489 = vmatpush.msra.mxu0 0.0
  %490 = vmatpush.msra.mxu0 0.0
  %491 = vmatpush.msra.mxu0 %v474
  %492 = vmatpush.msra.mxu0 %v465
  %493 = vmatpush.msra.mxu0 %v461
  %494 = vmatpush.msra.mxu0 %v457
  %495 = vmatpush.msra.mxu0 %v453
  %496 = vmatpush.msra.mxu0 %v449
  %497 = vmatpush.msra.mxu0 %v445
  %498 = vmatpush.msra.mxu0 %v441
  %499 = vmatpush.msra.mxu0 %v437
  %500 = vmatpush.msra.mxu0 %v433
  %501 = vmatmul.f32.gmra.mxu0 %v66
  %v502 = vpop.f32.mrf.mxu0
  %v503 = vadd.f32 0.0, %v502
  %504 = vdwg.mxu0
  %505 = vmatpush.msra.mxu0 0.0
  %506 = vmatpush.msra.mxu0 0.0
  %507 = vmatpush.msra.mxu0 0.0
  %508 = vmatpush.msra.mxu0 0.0
  %509 = vmatpush.msra.mxu0 0.0
  %510 = vmatpush.msra.mxu0 0.0
  %511 = vmatpush.msra.mxu0 %v477
  %512 = vmatpush.msra.mxu0 %v466
  %513 = vmatpush.msra.mxu0 %v462
  %514 = vmatpush.msra.mxu0 %v458
  %515 = vmatpush.msra.mxu0 %v454
  %516 = vmatpush.msra.mxu0 %v450
  %517 = vmatpush.msra.mxu0 %v446
  %518 = vmatpush.msra.mxu0 %v442
  %519 = vmatpush.msra.mxu0 %v438
  %520 = vmatpush.msra.mxu0 %v434
  %521 = vmatmul.f32.gmra.mxu0 %v66
  %v522 = vpop.f32.mrf.mxu0
  %v523 = vadd.f32 0.0, %v522
  %524 = vdwg.mxu0
  %525 = vmatpush.msra.mxu0 0.0
  %526 = vmatpush.msra.mxu0 0.0
  %527 = vmatpush.msra.mxu0 0.0
  %528 = vmatpush.msra.mxu0 0.0
  %529 = vmatpush.msra.mxu0 0.0
  %530 = vmatpush.msra.mxu0 0.0
  %531 = vmatpush.msra.mxu0 %v480
  %532 = vmatpush.msra.mxu0 %v467
  %533 = vmatpush.msra.mxu0 %v463
  %534 = vmatpush.msra.mxu0 %v459
  %535 = vmatpush.msra.mxu0 %v455
  %536 = vmatpush.msra.mxu0 %v451
  %537 = vmatpush.msra.mxu0 %v447
  %538 = vmatpush.msra.mxu0 %v443
  %539 = vmatpush.msra.mxu0 %v439
  %540 = vmatpush.msra.mxu0 %v435
  %541 = vmatmul.f32.gmra.mxu0 %v66
  %v542 = vpop.f32.mrf.mxu0
  %v543 = vadd.f32 0.0, %v542
  %544 = vdwg.mxu0
  %545 = vmatpush.msra.mxu0 0.0
  %546 = vmatpush.msra.mxu0 0.0
  %547 = vmatpush.msra.mxu0 0.0
  %548 = vmatpush.msra.mxu0 0.0
  %549 = vmatpush.msra.mxu0 0.0
  %550 = vmatpush.msra.mxu0 0.0
  %551 = vmatpush.msra.mxu0 %v483
  %552 = vmatpush.msra.mxu0 %v468
  %553 = vmatpush.msra.mxu0 %v464
  %554 = vmatpush.msra.mxu0 %v460
  %555 = vmatpush.msra.mxu0 %v456
  %556 = vmatpush.msra.mxu0 %v452
  %557 = vmatpush.msra.mxu0 %v448
  %558 = vmatpush.msra.mxu0 %v444
  %559 = vmatpush.msra.mxu0 %v440
  %560 = vmatpush.msra.mxu0 %v436
  %561 = vmatmul.f32.gmra.mxu0 %v66
  %v562 = vpop.f32.mrf.mxu0
  %v563 = vadd.f32 0.0, %v562
  %564 = vdwg.mxu0
  %v565 = vmax.f32 %v429, %v503
  %v566 = vmax.f32 %v430, %v523
  %v567 = vmax.f32 %v431, %v543
  %v568 = vmax.f32 %v432, %v563
  %v569 = vld [vmem:[%s5] sm:$0xff]
  %571 = vset.pattern.permute.xlu0 0
  %572 = vperm.xlu0 %571, %v569
  %v573 = vpop.permute.xlu0 %572
  %v575 = vadd.f32 %v565, %v573
  %v576 = vadd.f32 %v566, %v573
  %v577 = vadd.f32 %v567, %v573
  %v578 = vadd.f32 %v568, %v573
  %v579 = vmax.f32 %v575, 0.0
  %v580 = vmax.f32 %v576, 0.0
  %v581 = vmax.f32 %v577, 0.0
  %v582 = vmax.f32 %v578, 0.0
  %583 = vst [vmem:[%s6] sm:$0xff] %v579
  %584 = vst [vmem:[%s6 + $0x8] sm:$0xff] %v580
  %585 = vst [vmem:[%s6 + $0x10] sm:$0xff] %v581
  %vm586 = vcmask 64512
  %587 = vst.msk [vmem:[%s6 + $0x18] sm:$0xff] %vm586, %v582
  // Predicated region
  $region26: #{net_forward.3} parent=0 // pred_check
    _
  $region27: #{net_forward.3} parent=0 // pred_check_branch
    %589 = sbr.rel (0) target = $region29
  $region28: #{net_forward.3} parent=0 // pred_region
    _
  $region29: #{net_forward.3} parent=0 // pred_fallthru
    _
  // Predicated region
  $region30: #{net_forward.3} parent=0 // pred_check
    _
  $region31: #{net_forward.3} parent=0 // pred_check_branch
    %591 = sbr.rel (0) target = $region33
  $region32: #{net_forward.3} parent=0 // pred_region
    _
  $region33: #{net_forward.3} parent=0 // pred_fallthru
    _

// kernel: net_forward.4
$region0: #{net_forward.4}
  #allocation0 [shape = 'u32[]', space=smem, size = 0x4, offset = 0x4, fixed_abs, tag = 'smem constant byte address 0x4 - core index']
  #allocation1 [shape = 'u32[72,128]{1,0:T(1,128)}', space=vmem, size = 0x9000, scoped, tag = 'internal scratch']
  %s0 = inlined_call_operand.vmem [shape: f32[200,50], index: 0, kind: input, shape index: {}]
  %s1 = inlined_call_operand.vmem [shape: f32[200,50], index: 1, kind: input, shape index: {}]
  %s2 = inlined_call_operand.vmem [shape: f32[200,50], index: 2, kind: input, shape index: {}]
  %s3 = inlined_call_operand.vmem [shape: f32[200,50], index: 3, kind: input, shape index: {}]
  %s4 = inlined_call_operand.vmem [shape: f32[16,200], index: 4, kind: input, shape index: {}]
  %s5 = inlined_call_operand.vmem [shape: f32[16,1], index: 5, kind: input, shape index: {}]
  %s6 = inlined_call_operand.vmem [shape: f32[16,50], index: 6, kind: output, shape index: {}]
  %s7 = sld [smem:[#allocation0]]
  $region34: #{net_forward.4} parent=0
    _
  %s9 = ssub.s32 1, %s7
  %s10 = scalar_select 0, %s9, %s7
  // Predicated region
  $region2: #{net_forward.4} parent=0 // pred_check
    _
  $region3: #{net_forward.4} parent=0 // pred_check_branch
    %12 = sbr.rel (0) target = $region5
  $region4: #{net_forward.4} parent=0 // pred_region
    _
  $region5: #{net_forward.4} parent=0 // pred_fallthru
    _
  // Predicated region
  $region6: #{net_forward.4} parent=0 // pred_check
    _
  $region7: #{net_forward.4} parent=0 // pred_check_branch
    %14 = sbr.rel (0) target = $region9
  $region8: #{net_forward.4} parent=0 // pred_region
    _
  $region9: #{net_forward.4} parent=0 // pred_fallthru
    _
  // Predicated region
  $region10: #{net_forward.4} parent=0 // pred_check
    _
  $region11: #{net_forward.4} parent=0 // pred_check_branch
    %16 = sbr.rel (0) target = $region13
  $region12: #{net_forward.4} parent=0 // pred_region
    _
  $region13: #{net_forward.4} parent=0 // pred_fallthru
    _
  // Predicated region
  $region14: #{net_forward.4} parent=0 // pred_check
    _
  $region15: #{net_forward.4} parent=0 // pred_check_branch
    %18 = sbr.rel (0) target = $region17
  $region16: #{net_forward.4} parent=0 // pred_region
    _
  $region17: #{net_forward.4} parent=0 // pred_fallthru
    _
  // Predicated region
  $region18: #{net_forward.4} parent=0 // pred_check
    _
  $region19: #{net_forward.4} parent=0 // pred_check_branch
    %20 = sbr.rel (0) target = $region21
  $region20: #{net_forward.4} parent=0 // pred_region
    _
  $region21: #{net_forward.4} parent=0 // pred_fallthru
    _
  // Predicated region
  $region22: #{net_forward.4} parent=0 // pred_check
    _
  $region23: #{net_forward.4} parent=0 // pred_check_branch
    %22 = sbr.rel (0) target = $region25
  $region24: #{net_forward.4} parent=0 // pred_region
    _
  $region25: #{net_forward.4} parent=0 // pred_fallthru
    _
  %v23 = vld [vmem:[%s4] sm:$0xff]
  %v24 = vld [vmem:[%s4 + $0x8] sm:$0xff]
  %v25 = vld [vmem:[%s4 + $0x10] sm:$0xff]
  %v26 = vld [vmem:[%s4 + $0x18] sm:$0xff]
  %v27 = vld [vmem:[%s0] sm:$0xff]
  %v28 = vld [vmem:[%s0 + $0x8] sm:$0xff]
  %v29 = vld [vmem:[%s0 + $0x10] sm:$0xff]
  %v30 = vld [vmem:[%s0 + $0x18] sm:$0xff]
  %v31 = vld [vmem:[%s0 + $0x20] sm:$0xff]
  %v32 = vld [vmem:[%s0 + $0x28] sm:$0xff]
  %v33 = vld [vmem:[%s0 + $0x30] sm:$0xff]
  %v34 = vld [vmem:[%s0 + $0x38] sm:$0xff]
  %v35 = vld [vmem:[%s0 + $0x40] sm:$0xff]
  %v36 = vld [vmem:[%s0 + $0x48] sm:$0xff]
  %v37 = vld [vmem:[%s0 + $0x50] sm:$0xff]
  %v38 = vld [vmem:[%s0 + $0x58] sm:$0xff]
  %v39 = vld [vmem:[%s0 + $0x60] sm:$0xff]
  %v40 = vld [vmem:[%s0 + $0x68] sm:$0xff]
  %v41 = vld [vmem:[%s0 + $0x70] sm:$0xff]
  %v42 = vld [vmem:[%s0 + $0x78] sm:$0xff]
  %v43 = vld [vmem:[%s0 + $0x80] sm:$0xff]
  %v44 = vld [vmem:[%s0 + $0x88] sm:$0xff]
  %v45 = vld [vmem:[%s0 + $0x90] sm:$0xff]
  %v46 = vld [vmem:[%s0 + $0x98] sm:$0xff]
  %v47 = vld [vmem:[%s0 + $0xa0] sm:$0xff]
  %v48 = vld [vmem:[%s0 + $0xa8] sm:$0xff]
  %v49 = vld [vmem:[%s0 + $0xb0] sm:$0xff]
  %v50 = vld [vmem:[%s0 + $0xb8] sm:$0xff]
  %v51 = vld [vmem:[%s0 + $0xc0] sm:$0xff]
  %vm52 = vcmask 588800
  %v54 = vsel %vm52, %v24, 0
  %v57 = vsel %vm52, %v26, 0
  %59 = vmatpush.msra.mxu0 %v42
  %60 = vmatpush.msra.mxu0 %v41
  %61 = vmatpush.msra.mxu0 %v40
  %62 = vmatpush.msra.mxu0 %v39
  %63 = vmatpush.msra.mxu0 %v38
  %64 = vmatpush.msra.mxu0 %v37
  %65 = vmatpush.msra.mxu0 %v36
  %66 = vmatpush.msra.mxu0 %v35
  %67 = vmatpush.msra.mxu0 %v34
  %68 = vmatpush.msra.mxu0 %v33
  %69 = vmatpush.msra.mxu0 %v32
  %70 = vmatpush.msra.mxu0 %v31
  %71 = vmatpush.msra.mxu0 %v30
  %72 = vmatpush.msra.mxu0 %v29
  %73 = vmatpush.msra.mxu0 %v28
  %74 = vmatpush.msra.mxu0 %v27
  %75 = vmatmul.f32.gmra.mxu0 %v23
  %v76 = vpop.f32.mrf.mxu0
  %v77 = vadd.f32 0.0, %v76
  %78 = vmatmul.f32.gmra.mxu0 %v25
  %v79 = vpop.f32.mrf.mxu0
  %v80 = vadd.f32 0.0, %v79
  %81 = vdwg.mxu0
  %82 = vmatpush.msra.mxu0 0.0
  %83 = vmatpush.msra.mxu0 0.0
  %84 = vmatpush.msra.mxu0 0.0
  %85 = vmatpush.msra.mxu0 0.0
  %86 = vmatpush.msra.mxu0 0.0
  %87 = vmatpush.msra.mxu0 0.0
  %88 = vmatpush.msra.mxu0 0.0
  %89 = vmatpush.msra.mxu0 %v51
  %90 = vmatpush.msra.mxu0 %v50
  %91 = vmatpush.msra.mxu0 %v49
  %92 = vmatpush.msra.mxu0 %v48
  %93 = vmatpush.msra.mxu0 %v47
  %94 = vmatpush.msra.mxu0 %v46
  %95 = vmatpush.msra.mxu0 %v45
  %96 = vmatpush.msra.mxu0 %v44
  %97 = vmatpush.msra.mxu0 %v43
  %98 = vmatmul.f32.gmra.mxu0 %v54
  %v99 = vpop.f32.mrf.mxu0
  %v100 = vadd.f32 %v77, %v99
  %101 = vmatmul.f32.gmra.mxu0 %v57
  %v102 = vpop.f32.mrf.mxu0
  %v103 = vadd.f32 %v80, %v102
  %104 = vdwg.mxu0
  %v105 = vld [vmem:[%s1] sm:$0xff]
  %v106 = vld [vmem:[%s1 + $0x8] sm:$0xff]
  %v107 = vld [vmem:[%s1 + $0x10] sm:$0xff]
  %v108 = vld [vmem:[%s1 + $0x18] sm:$0xff]
  %v109 = vld [vmem:[%s1 + $0x20] sm:$0xff]
  %v110 = vld [vmem:[%s1 + $0x28] sm:$0xff]
  %v111 = vld [vmem:[%s1 + $0x30] sm:$0xff]
  %v112 = vld [vmem:[%s1 + $0x38] sm:$0xff]
  %v113 = vld [vmem:[%s1 + $0x40] sm:$0xff]
  %v114 = vld [vmem:[%s1 + $0x48] sm:$0xff]
  %v115 = vld [vmem:[%s1 + $0x50] sm:$0xff]
  %v116 = vld [vmem:[%s1 + $0x58] sm:$0xff]
  %v117 = vld [vmem:[%s1 + $0x60] sm:$0xff]
  %v118 = vld [vmem:[%s1 + $0x68] sm:$0xff]
  %v119 = vld [vmem:[%s1 + $0x70] sm:$0xff]
  %v120 = vld [vmem:[%s1 + $0x78] sm:$0xff]
  %v121 = vld [vmem:[%s1 + $0x80] sm:$0xff]
  %v122 = vld [vmem:[%s1 + $0x88] sm:$0xff]
  %v123 = vld [vmem:[%s1 + $0x90] sm:$0xff]
  %v124 = vld [vmem:[%s1 + $0x98] sm:$0xff]
  %v125 = vld [vmem:[%s1 + $0xa0] sm:$0xff]
  %v126 = vld [vmem:[%s1 + $0xa8] sm:$0xff]
  %v127 = vld [vmem:[%s1 + $0xb0] sm:$0xff]
  %v128 = vld [vmem:[%s1 + $0xb8] sm:$0xff]
  %v129 = vld [vmem:[%s1 + $0xc0] sm:$0xff]
  %130 = vmatpush.msra.mxu0 %v120
  %131 = vmatpush.msra.mxu0 %v119
  %132 = vmatpush.msra.mxu0 %v118
  %133 = vmatpush.msra.mxu0 %v117
  %134 = vmatpush.msra.mxu0 %v116
  %135 = vmatpush.msra.mxu0 %v115
  %136 = vmatpush.msra.mxu0 %v114
  %137 = vmatpush.msra.mxu0 %v113
  %138 = vmatpush.msra.mxu0 %v112
  %139 = vmatpush.msra.mxu0 %v111
  %140 = vmatpush.msra.mxu0 %v110
  %141 = vmatpush.msra.mxu0 %v109
  %142 = vmatpush.msra.mxu0 %v108
  %143 = vmatpush.msra.mxu0 %v107
  %144 = vmatpush.msra.mxu0 %v106
  %145 = vmatpush.msra.mxu0 %v105
  %146 = vmatmul.f32.gmra.mxu0 %v23
  %v147 = vpop.f32.mrf.mxu0
  %v148 = vadd.f32 0.0, %v147
  %149 = vmatmul.f32.gmra.mxu0 %v25
  %v150 = vpop.f32.mrf.mxu0
  %v151 = vadd.f32 0.0, %v150
  %152 = vdwg.mxu0
  %153 = vmatpush.msra.mxu0 0.0
  %154 = vmatpush.msra.mxu0 0.0
  %155 = vmatpush.msra.mxu0 0.0
  %156 = vmatpush.msra.mxu0 0.0
  %157 = vmatpush.msra.mxu0 0.0
  %158 = vmatpush.msra.mxu0 0.0
  %159 = vmatpush.msra.mxu0 0.0
  %160 = vmatpush.msra.mxu0 %v129
  %161 = vmatpush.msra.mxu0 %v128
  %162 = vmatpush.msra.mxu0 %v127
  %163 = vmatpush.msra.mxu0 %v126
  %164 = vmatpush.msra.mxu0 %v125
  %165 = vmatpush.msra.mxu0 %v124
  %166 = vmatpush.msra.mxu0 %v123
  %167 = vmatpush.msra.mxu0 %v122
  %168 = vmatpush.msra.mxu0 %v121
  %169 = vmatmul.f32.gmra.mxu0 %v54
  %v170 = vpop.f32.mrf.mxu0
  %v171 = vadd.f32 %v148, %v170
  %172 = vmatmul.f32.gmra.mxu0 %v57
  %v173 = vpop.f32.mrf.mxu0
  %v174 = vadd.f32 %v151, %v173
  %175 = vdwg.mxu0
  %v176 = vmax.f32 %v100, %v171
  %v177 = vmax.f32 %v103, %v174
  %v178 = vld [vmem:[%s2] sm:$0xff]
  %v179 = vld [vmem:[%s2 + $0x8] sm:$0xff]
  %v180 = vld [vmem:[%s2 + $0x10] sm:$0xff]
  %v181 = vld [vmem:[%s2 + $0x18] sm:$0xff]
  %v182 = vld [vmem:[%s2 + $0x20] sm:$0xff]
  %v183 = vld [vmem:[%s2 + $0x28] sm:$0xff]
  %v184 = vld [vmem:[%s2 + $0x30] sm:$0xff]
  %v185 = vld [vmem:[%s2 + $0x38] sm:$0xff]
  %v186 = vld [vmem:[%s2 + $0x40] sm:$0xff]
  %v187 = vld [vmem:[%s2 + $0x48] sm:$0xff]
  %v188 = vld [vmem:[%s2 + $0x50] sm:$0xff]
  %v189 = vld [vmem:[%s2 + $0x58] sm:$0xff]
  %v190 = vld [vmem:[%s2 + $0x60] sm:$0xff]
  %v191 = vld [vmem:[%s2 + $0x68] sm:$0xff]
  %v192 = vld [vmem:[%s2 + $0x70] sm:$0xff]
  %v193 = vld [vmem:[%s2 + $0x78] sm:$0xff]
  %v194 = vld [vmem:[%s2 + $0x80] sm:$0xff]
  %v195 = vld [vmem:[%s2 + $0x88] sm:$0xff]
  %v196 = vld [vmem:[%s2 + $0x90] sm:$0xff]
  %v197 = vld [vmem:[%s2 + $0x98] sm:$0xff]
  %v198 = vld [vmem:[%s2 + $0xa0] sm:$0xff]
  %v199 = vld [vmem:[%s2 + $0xa8] sm:$0xff]
  %v200 = vld [vmem:[%s2 + $0xb0] sm:$0xff]
  %v201 = vld [vmem:[%s2 + $0xb8] sm:$0xff]
  %v202 = vld [vmem:[%s2 + $0xc0] sm:$0xff]
  %203 = vmatpush.msra.mxu0 %v193
  %204 = vmatpush.msra.mxu0 %v192
  %205 = vmatpush.msra.mxu0 %v191
  %206 = vmatpush.msra.mxu0 %v190
  %207 = vmatpush.msra.mxu0 %v189
  %208 = vmatpush.msra.mxu0 %v188
  %209 = vmatpush.msra.mxu0 %v187
  %210 = vmatpush.msra.mxu0 %v186
  %211 = vmatpush.msra.mxu0 %v185
  %212 = vmatpush.msra.mxu0 %v184
  %213 = vmatpush.msra.mxu0 %v183
  %214 = vmatpush.msra.mxu0 %v182
  %215 = vmatpush.msra.mxu0 %v181
  %216 = vmatpush.msra.mxu0 %v180
  %217 = vmatpush.msra.mxu0 %v179
  %218 = vmatpush.msra.mxu0 %v178
  %219 = vmatmul.f32.gmra.mxu0 %v23
  %v220 = vpop.f32.mrf.mxu0
  %v221 = vadd.f32 0.0, %v220
  %222 = vmatmul.f32.gmra.mxu0 %v25
  %v223 = vpop.f32.mrf.mxu0
  %v224 = vadd.f32 0.0, %v223
  %225 = vdwg.mxu0
  %226 = vmatpush.msra.mxu0 0.0
  %227 = vmatpush.msra.mxu0 0.0
  %228 = vmatpush.msra.mxu0 0.0
  %229 = vmatpush.msra.mxu0 0.0
  %230 = vmatpush.msra.mxu0 0.0
  %231 = vmatpush.msra.mxu0 0.0
  %232 = vmatpush.msra.mxu0 0.0
  %233 = vmatpush.msra.mxu0 %v202
  %234 = vmatpush.msra.mxu0 %v201
  %235 = vmatpush.msra.mxu0 %v200
  %236 = vmatpush.msra.mxu0 %v199
  %237 = vmatpush.msra.mxu0 %v198
  %238 = vmatpush.msra.mxu0 %v197
  %239 = vmatpush.msra.mxu0 %v196
  %240 = vmatpush.msra.mxu0 %v195
  %241 = vmatpush.msra.mxu0 %v194
  %242 = vmatmul.f32.gmra.mxu0 %v54
  %v243 = vpop.f32.mrf.mxu0
  %v244 = vadd.f32 %v221, %v243
  %245 = vmatmul.f32.gmra.mxu0 %v57
  %v246 = vpop.f32.mrf.mxu0
  %v247 = vadd.f32 %v224, %v246
  %248 = vdwg.mxu0
  %v249 = vmax.f32 %v176, %v244
  %v250 = vmax.f32 %v177, %v247
  %v251 = vld [vmem:[%s3] sm:$0xff]
  %v252 = vld [vmem:[%s3 + $0x8] sm:$0xff]
  %v253 = vld [vmem:[%s3 + $0x10] sm:$0xff]
  %v254 = vld [vmem:[%s3 + $0x18] sm:$0xff]
  %v255 = vld [vmem:[%s3 + $0x20] sm:$0xff]
  %v256 = vld [vmem:[%s3 + $0x28] sm:$0xff]
  %v257 = vld [vmem:[%s3 + $0x30] sm:$0xff]
  %v258 = vld [vmem:[%s3 + $0x38] sm:$0xff]
  %v259 = vld [vmem:[%s3 + $0x40] sm:$0xff]
  %v260 = vld [vmem:[%s3 + $0x48] sm:$0xff]
  %v261 = vld [vmem:[%s3 + $0x50] sm:$0xff]
  %v262 = vld [vmem:[%s3 + $0x58] sm:$0xff]
  %v263 = vld [vmem:[%s3 + $0x60] sm:$0xff]
  %v264 = vld [vmem:[%s3 + $0x68] sm:$0xff]
  %v265 = vld [vmem:[%s3 + $0x70] sm:$0xff]
  %v266 = vld [vmem:[%s3 + $0x78] sm:$0xff]
  %v267 = vld [vmem:[%s3 + $0x80] sm:$0xff]
  %v268 = vld [vmem:[%s3 + $0x88] sm:$0xff]
  %v269 = vld [vmem:[%s3 + $0x90] sm:$0xff]
  %v270 = vld [vmem:[%s3 + $0x98] sm:$0xff]
  %v271 = vld [vmem:[%s3 + $0xa0] sm:$0xff]
  %v272 = vld [vmem:[%s3 + $0xa8] sm:$0xff]
  %v273 = vld [vmem:[%s3 + $0xb0] sm:$0xff]
  %v274 = vld [vmem:[%s3 + $0xb8] sm:$0xff]
  %v275 = vld [vmem:[%s3 + $0xc0] sm:$0xff]
  %276 = vmatpush.msra.mxu0 %v266
  %277 = vmatpush.msra.mxu0 %v265
  %278 = vmatpush.msra.mxu0 %v264
  %279 = vmatpush.msra.mxu0 %v263
  %280 = vmatpush.msra.mxu0 %v262
  %281 = vmatpush.msra.mxu0 %v261
  %282 = vmatpush.msra.mxu0 %v260
  %283 = vmatpush.msra.mxu0 %v259
  %284 = vmatpush.msra.mxu0 %v258
  %285 = vmatpush.msra.mxu0 %v257
  %286 = vmatpush.msra.mxu0 %v256
  %287 = vmatpush.msra.mxu0 %v255
  %288 = vmatpush.msra.mxu0 %v254
  %289 = vmatpush.msra.mxu0 %v253
  %290 = vmatpush.msra.mxu0 %v252
  %291 = vmatpush.msra.mxu0 %v251
  %292 = vmatmul.f32.gmra.mxu0 %v23
  %v293 = vpop.f32.mrf.mxu0
  %v294 = vadd.f32 0.0, %v293
  %295 = vmatmul.f32.gmra.mxu0 %v25
  %v296 = vpop.f32.mrf.mxu0
  %v297 = vadd.f32 0.0, %v296
  %298 = vdwg.mxu0
  %299 = vmatpush.msra.mxu0 0.0
  %300 = vmatpush.msra.mxu0 0.0
  %301 = vmatpush.msra.mxu0 0.0
  %302 = vmatpush.msra.mxu0 0.0
  %303 = vmatpush.msra.mxu0 0.0
  %304 = vmatpush.msra.mxu0 0.0
  %305 = vmatpush.msra.mxu0 0.0
  %306 = vmatpush.msra.mxu0 %v275
  %307 = vmatpush.msra.mxu0 %v274
  %308 = vmatpush.msra.mxu0 %v273
  %309 = vmatpush.msra.mxu0 %v272
  %310 = vmatpush.msra.mxu0 %v271
  %311 = vmatpush.msra.mxu0 %v270
  %312 = vmatpush.msra.mxu0 %v269
  %313 = vmatpush.msra.mxu0 %v268
  %314 = vmatpush.msra.mxu0 %v267
  %315 = vmatmul.f32.gmra.mxu0 %v54
  %v316 = vpop.f32.mrf.mxu0
  %v317 = vadd.f32 %v294, %v316
  %318 = vmatmul.f32.gmra.mxu0 %v57
  %v319 = vpop.f32.mrf.mxu0
  %v320 = vadd.f32 %v297, %v319
  %321 = vdwg.mxu0
  %v322 = vmax.f32 %v249, %v317
  %v323 = vmax.f32 %v250, %v320
  %v324 = vld [vmem:[%s5] sm:$0xff]
  %v325 = vld [vmem:[%s5 + $0x8] sm:$0xff]
  %327 = vset.pattern.permute.xlu0 0
  %328 = vperm.xlu0 %327, %v324
  %v329 = vpop.permute.xlu0 %328
  %332 = vset.pattern.permute.xlu0 0
  %333 = vperm.xlu0 %332, %v325
  %v334 = vpop.permute.xlu0 %333
  %v336 = vadd.f32 %v322, %v329
  %v337 = vadd.f32 %v323, %v334
  %v338 = vmax.f32 %v336, 0.0
  %v339 = vmax.f32 %v337, 0.0
  %vm340 = vcmask 408576
  %341 = vst.msk [vmem:[%s6] sm:$0xff] %vm340, %v338
  %342 = vst.msk [vmem:[%s6 + $0x8] sm:$0xff] %vm340, %v339
  // Predicated region
  $region26: #{net_forward.4} parent=0 // pred_check
    _
  $region27: #{net_forward.4} parent=0 // pred_check_branch
    %344 = sbr.rel (0) target = $region29
  $region28: #{net_forward.4} parent=0 // pred_region
    _
  $region29: #{net_forward.4} parent=0 // pred_fallthru
    _
  // Predicated region
  $region30: #{net_forward.4} parent=0 // pred_check
    _
  $region31: #{net_forward.4} parent=0 // pred_check_branch
    %346 = sbr.rel (0) target = $region33
  $region32: #{net_forward.4} parent=0 // pred_region
    _
  $region33: #{net_forward.4} parent=0 // pred_fallthru
    _

// kernel: net_forward.5
$region0: #{net_forward.5}
  #allocation0 [shape = 'u32[]', space=smem, size = 0x4, offset = 0x4, fixed_abs, tag = 'smem constant byte address 0x4 - core index']
  #allocation1 [shape = 'u32[72,128]{1,0:T(1,128)}', space=vmem, size = 0x9000, scoped, tag = 'internal scratch']
  %s0 = inlined_call_operand.vmem [shape: f32[2,400], index: 0, kind: input, shape index: {}]
  %s1 = inlined_call_operand.vmem [shape: f32[400,120], index: 1, kind: input, shape index: {}]
  %s2 = inlined_call_operand.vmem [shape: f32[1,120], index: 2, kind: input, shape index: {}]
  %s3 = inlined_call_operand.vmem [shape: f32[120,84], index: 3, kind: input, shape index: {}]
  %s4 = inlined_call_operand.vmem [shape: f32[1,84], index: 4, kind: input, shape index: {}]
  %s5 = inlined_call_operand.vmem [shape: f32[84,10], index: 5, kind: input, shape index: {}]
  %s6 = inlined_call_operand.vmem [shape: f32[1,10], index: 6, kind: input, shape index: {}]
  %s7 = inlined_call_operand.hbm [shape: f32[2,10], index: 7, kind: output, shape index: {}]
  %s8 = sld [smem:[#allocation0]]
  $region38: #{net_forward.5} parent=0
    _
  %s10 = ssub.s32 1, %s8
  %s11 = scalar_select 0, %s10, %s8
  $region1: #{net_forward.5} parent=0
    #allocation2 [shape = 'u8[1024]{0}', space=vmem, size = 0x400, scoped, tag = 'output window, operand 0, single buffered']
    #allocation3 [shape = 's32[1]{0}', space=sflag, size = 0x4, scoped, tag = 'scoped memory for net_forward.5']
    %12 = vsyncpa [#allocation3], 0
    // Predicated region
    $region2: #{net_forward.5} parent=1 // pred_check
      _
    $region3: #{net_forward.5} parent=1 // pred_check_branch
      %14 = sbr.rel (0) target = $region5
    $region4: #{net_forward.5} parent=1 // pred_region
      _
    $region5: #{net_forward.5} parent=1 // pred_fallthru
      _
    // Predicated region
    $region6: #{net_forward.5} parent=1 // pred_check
      _
    $region7: #{net_forward.5} parent=1 // pred_check_branch
      %16 = sbr.rel (0) target = $region9
    $region8: #{net_forward.5} parent=1 // pred_region
      _
    $region9: #{net_forward.5} parent=1 // pred_fallthru
      _
    // Predicated region
    $region10: #{net_forward.5} parent=1 // pred_check
      _
    $region11: #{net_forward.5} parent=1 // pred_check_branch
      %18 = sbr.rel (0) target = $region13
    $region12: #{net_forward.5} parent=1 // pred_region
      _
    $region13: #{net_forward.5} parent=1 // pred_fallthru
      _
    // Predicated region
    $region14: #{net_forward.5} parent=1 // pred_check
      _
    $region15: #{net_forward.5} parent=1 // pred_check_branch
      %20 = sbr.rel (0) target = $region17
    $region16: #{net_forward.5} parent=1 // pred_region
      _
    $region17: #{net_forward.5} parent=1 // pred_fallthru
      _
    // Predicated region
    $region18: #{net_forward.5} parent=1 // pred_check
      _
    $region19: #{net_forward.5} parent=1 // pred_check_branch
      %22 = sbr.rel (0) target = $region21
    $region20: #{net_forward.5} parent=1 // pred_region
      _
    $region21: #{net_forward.5} parent=1 // pred_fallthru
      _
    // Predicated region
    $region22: #{net_forward.5} parent=1 // pred_check
      _
    $region23: #{net_forward.5} parent=1 // pred_check_branch
      %24 = sbr.rel (0) target = $region25
    $region24: #{net_forward.5} parent=1 // pred_region
      _
    $region25: #{net_forward.5} parent=1 // pred_fallthru
      _
    // Predicated region
    $region26: #{net_forward.5} parent=1 // pred_check
      _
    $region27: #{net_forward.5} parent=1 // pred_check_branch
      %26 = sbr.rel (0) target = $region29
    $region28: #{net_forward.5} parent=1 // pred_region
      _
    $region29: #{net_forward.5} parent=1 // pred_fallthru
      _
    %v27 = vld [vmem:[%s0] sm:$0xff]
    %v28 = vld [vmem:[%s1] sm:$0xff]
    %v29 = vld [vmem:[%s1 + $0x8] sm:$0xff]
    %v30 = vld [vmem:[%s1 + $0x10] sm:$0xff]
    %v31 = vld [vmem:[%s1 + $0x18] sm:$0xff]
    %v32 = vld [vmem:[%s1 + $0x20] sm:$0xff]
    %v33 = vld [vmem:[%s1 + $0x28] sm:$0xff]
    %v34 = vld [vmem:[%s1 + $0x30] sm:$0xff]
    %v35 = vld [vmem:[%s1 + $0x38] sm:$0xff]
    %v36 = vld [vmem:[%s1 + $0x40] sm:$0xff]
    %v37 = vld [vmem:[%s1 + $0x48] sm:$0xff]
    %v38 = vld [vmem:[%s1 + $0x50] sm:$0xff]
    %v39 = vld [vmem:[%s1 + $0x58] sm:$0xff]
    %v40 = vld [vmem:[%s1 + $0x60] sm:$0xff]
    %v41 = vld [vmem:[%s1 + $0x68] sm:$0xff]
    %v42 = vld [vmem:[%s1 + $0x70] sm:$0xff]
    %v43 = vld [vmem:[%s1 + $0x78] sm:$0xff]
    %v44 = vld [vmem:[%s1 + $0x80] sm:$0xff]
    %v45 = vld [vmem:[%s1 + $0x88] sm:$0xff]
    %v46 = vld [vmem:[%s1 + $0x90] sm:$0xff]
    %v47 = vld [vmem:[%s1 + $0x98] sm:$0xff]
    %v48 = vld [vmem:[%s1 + $0xa0] sm:$0xff]
    %v49 = vld [vmem:[%s1 + $0xa8] sm:$0xff]
    %v50 = vld [vmem:[%s1 + $0xb0] sm:$0xff]
    %v51 = vld [vmem:[%s1 + $0xb8] sm:$0xff]
    %v52 = vld [vmem:[%s1 + $0xc0] sm:$0xff]
    %v53 = vld [vmem:[%s1 + $0xc8] sm:$0xff]
    %v54 = vld [vmem:[%s1 + $0xd0] sm:$0xff]
    %v55 = vld [vmem:[%s1 + $0xd8] sm:$0xff]
    %v56 = vld [vmem:[%s1 + $0xe0] sm:$0xff]
    %v57 = vld [vmem:[%s1 + $0xe8] sm:$0xff]
    %v58 = vld [vmem:[%s1 + $0xf0] sm:$0xff]
    %v59 = vld [vmem:[%s1 + $0xf8] sm:$0xff]
    %v60 = vld [vmem:[%s1 + $0x100] sm:$0xff]
    %v61 = vld [vmem:[%s1 + $0x108] sm:$0xff]
    %v62 = vld [vmem:[%s1 + $0x110] sm:$0xff]
    %v63 = vld [vmem:[%s1 + $0x118] sm:$0xff]
    %v64 = vld [vmem:[%s1 + $0x120] sm:$0xff]
    %v65 = vld [vmem:[%s1 + $0x128] sm:$0xff]
    %v66 = vld [vmem:[%s1 + $0x130] sm:$0xff]
    %v67 = vld [vmem:[%s1 + $0x138] sm:$0xff]
    %v68 = vld [vmem:[%s1 + $0x140] sm:$0xff]
    %v69 = vld [vmem:[%s1 + $0x148] sm:$0xff]
    %v70 = vld [vmem:[%s1 + $0x150] sm:$0xff]
    %v71 = vld [vmem:[%s1 + $0x158] sm:$0xff]
    %v72 = vld [vmem:[%s1 + $0x160] sm:$0xff]
    %v73 = vld [vmem:[%s1 + $0x168] sm:$0xff]
    %v74 = vld [vmem:[%s1 + $0x170] sm:$0xff]
    %v75 = vld [vmem:[%s1 + $0x178] sm:$0xff]
    %v76 = vld [vmem:[%s1 + $0x180] sm:$0xff]
    %v77 = vld [vmem:[%s1 + $0x188] sm:$0xff]
    %v78 = vld [vmem:[%s2] sm:$0x1]
    %v80 = vperm.slane %v78, 0
    %83 = vst [vmem:[#allocation1] ss:$4 sm:$0xff] %v27
    %v84 = vld.sshfl [vmem:[#allocation1] sm:$0xff pattern:$0x73625140]
    %v85 = vld.sshfl [vmem:[#allocation1 + $0x8] sm:$0xff pattern:$0x73625140]
    %v86 = vld.sshfl [vmem:[#allocation1 + $0x10] sm:$0xff pattern:$0x73625140]
    %v87 = vld.sshfl [vmem:[#allocation1 + $0x18] sm:$0xff pattern:$0x73625140]
    %vm91 = vcmask 130048
    %v92 = vsel %vm91, %v87, 0
    %94 = vmatpush.msra.mxu0 %v43
    %95 = vmatpush.msra.mxu0 %v42
    %96 = vmatpush.msra.mxu0 %v41
    %97 = vmatpush.msra.mxu0 %v40
    %98 = vmatpush.msra.mxu0 %v39
    %99 = vmatpush.msra.mxu0 %v38
    %100 = vmatpush.msra.mxu0 %v37
    %101 = vmatpush.msra.mxu0 %v36
    %102 = vmatpush.msra.mxu0 %v35
    %103 = vmatpush.msra.mxu0 %v34
    %104 = vmatpush.msra.mxu0 %v33
    %105 = vmatpush.msra.mxu0 %v32
    %106 = vmatpush.msra.mxu0 %v31
    %107 = vmatpush.msra.mxu0 %v30
    %108 = vmatpush.msra.mxu0 %v29
    %109 = vmatpush.msra.mxu0 %v28
    %110 = vmatmul.f32.gmra.mxu0 %v84
    %v111 = vpop.f32.mrf.mxu0
    %v112 = vadd.f32 %v80, %v111
    %113 = vdwg.mxu0
    %114 = vmatpush.msra.mxu0 %v59
    %115 = vmatpush.msra.mxu0 %v58
    %116 = vmatpush.msra.mxu0 %v57
    %117 = vmatpush.msra.mxu0 %v56
    %118 = vmatpush.msra.mxu0 %v55
    %119 = vmatpush.msra.mxu0 %v54
    %120 = vmatpush.msra.mxu0 %v53
    %121 = vmatpush.msra.mxu0 %v52
    %122 = vmatpush.msra.mxu0 %v51
    %123 = vmatpush.msra.mxu0 %v50
    %124 = vmatpush.msra.mxu0 %v49
    %125 = vmatpush.msra.mxu0 %v48
    %126 = vmatpush.msra.mxu0 %v47
    %127 = vmatpush.msra.mxu0 %v46
    %128 = vmatpush.msra.mxu0 %v45
    %129 = vmatpush.msra.mxu0 %v44
    %130 = vmatmul.f32.gmra.mxu0 %v85
    %v131 = vpop.f32.mrf.mxu0
    %v132 = vadd.f32 %v112, %v131
    %133 = vdwg.mxu0
    %134 = vmatpush.msra.mxu0 %v75
    %135 = vmatpush.msra.mxu0 %v74
    %136 = vmatpush.msra.mxu0 %v73
    %137 = vmatpush.msra.mxu0 %v72
    %138 = vmatpush.msra.mxu0 %v71
    %139 = vmatpush.msra.mxu0 %v70
    %140 = vmatpush.msra.mxu0 %v69
    %141 = vmatpush.msra.mxu0 %v68
    %142 = vmatpush.msra.mxu0 %v67
    %143 = vmatpush.msra.mxu0 %v66
    %144 = vmatpush.msra.mxu0 %v65
    %145 = vmatpush.msra.mxu0 %v64
    %146 = vmatpush.msra.mxu0 %v63
    %147 = vmatpush.msra.mxu0 %v62
    %148 = vmatpush.msra.mxu0 %v61
    %149 = vmatpush.msra.mxu0 %v60
    %150 = vmatmul.f32.gmra.mxu0 %v86
    %v151 = vpop.f32.mrf.mxu0
    %v152 = vadd.f32 %v132, %v151
    %153 = vdwg.mxu0
    %154 = vmatpush.msra.mxu0 0.0
    %155 = vmatpush.msra.mxu0 0.0
    %156 = vmatpush.msra.mxu0 0.0
    %157 = vmatpush.msra.mxu0 0.0
    %158 = vmatpush.msra.mxu0 0.0
    %159 = vmatpush.msra.mxu0 0.0
    %160 = vmatpush.msra.mxu0 0.0
    %161 = vmatpush.msra.mxu0 0.0
    %162 = vmatpush.msra.mxu0 0.0
    %163 = vmatpush.msra.mxu0 0.0
    %164 = vmatpush.msra.mxu0 0.0
    %165 = vmatpush.msra.mxu0 0.0
    %166 = vmatpush.msra.mxu0 0.0
    %167 = vmatpush.msra.mxu0 0.0
    %168 = vmatpush.msra.mxu0 %v77
    %169 = vmatpush.msra.mxu0 %v76
    %170 = vmatmul.f32.gmra.mxu0 %v92
    %v171 = vpop.f32.mrf.mxu0
    %v172 = vadd.f32 %v152, %v171
    %173 = vdwg.mxu0
    %v174 = vmax.f32 %v172, 0.0
    %v175 = vld [vmem:[%s3] sm:$0xff]
    %v176 = vld [vmem:[%s3 + $0x8] sm:$0xff]
    %v177 = vld [vmem:[%s3 + $0x10] sm:$0xff]
    %v178 = vld [vmem:[%s3 + $0x18] sm:$0xff]
    %v179 = vld [vmem:[%s3 + $0x20] sm:$0xff]
    %v180 = vld [vmem:[%s3 + $0x28] sm:$0xff]
    %v181 = vld [vmem:[%s3 + $0x30] sm:$0xff]
    %v182 = vld [vmem:[%s3 + $0x38] sm:$0xff]
    %v183 = vld [vmem:[%s3 + $0x40] sm:$0xff]
    %v184 = vld [vmem:[%s3 + $0x48] sm:$0xff]
    %v185 = vld [vmem:[%s3 + $0x50] sm:$0xff]
    %v186 = vld [vmem:[%s3 + $0x58] sm:$0xff]
    %v187 = vld [vmem:[%s3 + $0x60] sm:$0xff]
    %v188 = vld [vmem:[%s3 + $0x68] sm:$0xff]
    %v189 = vld [vmem:[%s3 + $0x70] sm:$0xff]
    %v190 = vld [vmem:[%s4] sm:$0x1]
    %v192 = vperm.slane %v190, 0
    %vm194 = vcmask 982016
    %v196 = vsel %vm194, %v174, 0
    %198 = vmatpush.msra.mxu0 0.0
    %199 = vmatpush.msra.mxu0 %v189
    %200 = vmatpush.msra.mxu0 %v188
    %201 = vmatpush.msra.mxu0 %v187
    %202 = vmatpush.msra.mxu0 %v186
    %203 = vmatpush.msra.mxu0 %v185
    %204 = vmatpush.msra.mxu0 %v184
    %205 = vmatpush.msra.mxu0 %v183
    %206 = vmatpush.msra.mxu0 %v182
    %207 = vmatpush.msra.mxu0 %v181
    %208 = vmatpush.msra.mxu0 %v180
    %209 = vmatpush.msra.mxu0 %v179
    %210 = vmatpush.msra.mxu0 %v178
    %211 = vmatpush.msra.mxu0 %v177
    %212 = vmatpush.msra.mxu0 %v176
    %213 = vmatpush.msra.mxu0 %v175
    %214 = vmatmul.f32.gmra.mxu0 %v196
    %v215 = vpop.f32.mrf.mxu0
    %v216 = vadd.f32 %v192, %v215
    %217 = vdwg.mxu0
    %v218 = vmax.f32 %v216, 0.0
    %v219 = vld [vmem:[%s5] sm:$0xff]
    %v220 = vld [vmem:[%s5 + $0x8] sm:$0xff]
    %v221 = vld [vmem:[%s5 + $0x10] sm:$0xff]
    %v222 = vld [vmem:[%s5 + $0x18] sm:$0xff]
    %v223 = vld [vmem:[%s5 + $0x20] sm:$0xff]
    %v224 = vld [vmem:[%s5 + $0x28] sm:$0xff]
    %v225 = vld [vmem:[%s5 + $0x30] sm:$0xff]
    %v226 = vld [vmem:[%s5 + $0x38] sm:$0xff]
    %v227 = vld [vmem:[%s5 + $0x40] sm:$0xff]
    %v228 = vld [vmem:[%s5 + $0x48] sm:$0xff]
    %v229 = vld [vmem:[%s5 + $0x50] sm:$0xf]
    %v230 = vld [vmem:[%s6] sm:$0x1]
    %v232 = vperm.slane %v230, 0
    %vm234 = vcmask 687104
    %v236 = vsel %vm234, %v218, 0
    %vm238 = vcmask 1043456
    %v240 = vsel %vm238, %v229, 0
    %242 = vmatpush.msra.mxu0 0.0
    %243 = vmatpush.msra.mxu0 0.0
    %244 = vmatpush.msra.mxu0 0.0
    %245 = vmatpush.msra.mxu0 0.0
    %246 = vmatpush.msra.mxu0 0.0
    %247 = vmatpush.msra.mxu0 %v240
    %248 = vmatpush.msra.mxu0 %v228
    %249 = vmatpush.msra.mxu0 %v227
    %250 = vmatpush.msra.mxu0 %v226
    %251 = vmatpush.msra.mxu0 %v225
    %252 = vmatpush.msra.mxu0 %v224
    %253 = vmatpush.msra.mxu0 %v223
    %254 = vmatpush.msra.mxu0 %v222
    %255 = vmatpush.msra.mxu0 %v221
    %256 = vmatpush.msra.mxu0 %v220
    %257 = vmatpush.msra.mxu0 %v219
    %258 = vmatmul.f32.gmra.mxu0 %v236
    %v259 = vpop.f32.mrf.mxu0
    %v260 = vadd.f32 %v232, %v259
    %261 = vdwg.mxu0
    %vm262 = vcmask 74752
    %263 = vst.msk [vmem:[#allocation2] sm:$0x3] %vm262, %v260
    // Predicated region
    $region30: #{net_forward.5} parent=1 // pred_check
      _
    $region31: #{net_forward.5} parent=1 // pred_check_branch
      %265 = sbr.rel (0) target = $region33
    $region32: #{net_forward.5} parent=1 // pred_region
      %267 = vsyncadd [#allocation3], 0
      %s269 = sshll.u32 [#allocation2], 4
      %s270 = int_to_ptr.vmem [resolvable:$true] %s269
      %s271 = sshll.u32 %s7, 4
      %s272 = int_to_ptr.hbm [resolvable:$true] %s271
      %274 = dma.vmem_to_hbm [thread:$0]  %s270, 32, %s272, [#allocation3]
    $region33: #{net_forward.5} parent=1 // pred_fallthru
      _
    // Predicated region
    $region34: #{net_forward.5} parent=1 // pred_check
      _
    $region35: #{net_forward.5} parent=1 // pred_check_branch
      %276 = sbr.rel (0) target = $region37
    $region36: #{net_forward.5} parent=1 // pred_region
      %278 = dma.done [#allocation3], 32
    $region37: #{net_forward.5} parent=1 // pred_fallthru
      _
    %279 = vsyncpa [#allocation3], 1

</llo_original>
